<compile_context>
chip_gen: v6e
topology: v6e:2x2x1
jax: 0.10.0
libtpu: 0.0.40
codegen_flags: <defaults>
</compile_context>

<pallas_src>
from functools import partial

import jax
import jax.numpy as jnp
from jax.experimental import pallas as pl
from jax.experimental.pallas import tpu as pltpu


def _round8(n):
    return -(-n // 8) * 8


def _round128(n):
    return -(-n // 128) * 128


# --------------------------- Pallas kernel ----------------------------------

def _conv3x3_kernel(x_ref, w_ref, b_ref, scale_ref, shift_ref, mask_ref,
                    y_ref, sum_ref, sq_ref, *, wp, pre_act):
    """Fused (pre-BN affine + LeakyReLU) -> 3x3 conv -> bias -> BN-stat partials.

    x_ref:     (1, Cin, LB)   LB = B_TILE * Lpad flattened padded images
    w_ref:     (Cout, 9*Cin)  taps stacked along K: k = (3*i + j)*Cin + c
    b_ref:     (Cout, 1)      conv bias
    scale_ref: (Cin, 1)       previous-BN scale   (used iff pre_act)
    shift_ref: (Cin, 1)       previous-BN shift   (used iff pre_act)
    mask_ref:  (1, LB)        1.0 on interior positions, 0.0 on ring / lane pad
    y_ref:     (1, Cout, LB)  raw conv output on the padded grid (ring = junk)
    sum_ref:   (1, Cout, 1)   per-block sum of valid outputs
    sq_ref:    (1, Cout, 1)   per-block sum of squares of valid outputs
    """
    lane_len = x_ref.shape[-1]

    x = x_ref[0]                                     # (Cin, LB)
    if pre_act:
        # Fused BatchNorm-affine + LeakyReLU of the previous layer, then force
        # the pad ring / lane padding back to zero (PyTorch zero-pads the
        # *activated* tensor).
        a = x * scale_ref[...] + shift_ref[...]
        a = jnp.where(a >= 0, a, 0.01 * a)
        a = a * mask_ref[...]
    else:
        a = x                                        # input already zero-padded

    # 9 taps as pure XLU lane rotations of the zero-ringed activation
    # (interior reads never wrap: wrap-around only lands on ring/pad lanes).
    taps = []
    for i in range(3):
        for j in range(3):
            d = (i - 1) * wp + (j - 1)               # lane offset of tap (i, j)
            s = (-d) % lane_len                      # jnp.roll-style shift
            taps.append(a if s == 0 else pltpu.roll(a, shift=s, axis=1))

    # Single MXU matmul with K = 9*Cin (sublane-aligned concat: Cin % 8 == 0).
    stacked = jnp.concatenate(taps, axis=0)          # (9*Cin, LB)
    y = jnp.dot(w_ref[...], stacked,
                preferred_element_type=jnp.float32) + b_ref[...]
    y_ref[0] = y

    # Fused partial statistics for the next BatchNorm (valid positions only).
    ym = y * mask_ref[...]
    sum_ref[0] = jnp.sum(ym, axis=1, keepdims=True)
    sq_ref[0] = jnp.sum(ym * ym, axis=1, keepdims=True)


# --------------------------- pallas_call wrapper -----------------------------

def conv3x3_bn_stats(xpf, w9, bias, pre_scale, pre_shift, mask, *, wp, pre_act):
    """3x3 conv on the flattened padded grid; returns (y, sum, sumsq)."""
    G, cin, LB = xpf.shape
    cout, k = w9.shape

    flops = 2 * G * cout * k * LB
    bytes_accessed = 4 * (xpf.size + w9.size + mask.size + G * cout * (LB + 2))

    return pl.pallas_call(
        partial(_conv3x3_kernel, wp=wp, pre_act=pre_act),
        out_shape=(
            jax.ShapeDtypeStruct((G, cout, LB), jnp.float32),
            jax.ShapeDtypeStruct((G, cout, 1), jnp.float32),
            jax.ShapeDtypeStruct((G, cout, 1), jnp.float32),
        ),
        grid_spec=pltpu.PrefetchScalarGridSpec(
            num_scalar_prefetch=0,
            grid=(G,),
            in_specs=[
                pl.BlockSpec((1, cin, LB), lambda n: (n, 0, 0)),
                pl.BlockSpec((cout, k), lambda n: (0, 0)),
                pl.BlockSpec((cout, 1), lambda n: (0, 0)),
                pl.BlockSpec((cin, 1), lambda n: (0, 0)),
                pl.BlockSpec((cin, 1), lambda n: (0, 0)),
                pl.BlockSpec((1, LB), lambda n: (0, 0)),
            ],
            out_specs=(
                pl.BlockSpec((1, cout, LB), lambda n: (n, 0, 0)),
                pl.BlockSpec((1, cout, 1), lambda n: (n, 0, 0)),
                pl.BlockSpec((1, cout, 1), lambda n: (n, 0, 0)),
            ),
        ),
        compiler_params=pltpu.CompilerParams(
            dimension_semantics=("parallel",)),
        cost_estimate=pl.CostEstimate(flops=flops, transcendentals=0,
                                      bytes_accessed=bytes_accessed),
    )(xpf, w9, bias, pre_scale, pre_shift, mask)


# --------------------------- DoubleConv forward ------------------------------

def _bn_scale_shift(sum_c, sq_c, gamma, beta, count, eps=1e-5):
    # training-mode BatchNorm: biased batch statistics (fresh nn.Module).
    mean = sum_c / count
    var = jnp.maximum(sq_c / count - mean * mean, 0.0)
    scale = gamma / jnp.sqrt(var + eps)
    shift = beta - mean * scale
    return scale, shift


def _pack_w9(w_oihw):
    """(O, I, 3, 3) -> (O, 9*Ip): taps i-major/j-minor, input channels minor,
    input channels zero-padded to a multiple of 8."""
    o, i = w_oihw.shape[0], w_oihw.shape[1]
    ip = _round8(i)
    wt = jnp.transpose(w_oihw, (0, 2, 3, 1))                  # (O, 3, 3, I)
    wt = jnp.pad(wt, ((0, 0), (0, 0), (0, 0), (0, ip - i)))
    return wt.reshape(o, 9 * ip)


def _pick_b_tile(n, cin_p, cmax, lpad):
    """Samples folded into the lane dim per grid step.

    Keep per-step f32 footprint well under the 32 MiB scoped-VMEM default
    (portable to v7x's 64 MiB physical VMEM) and keep >= 2 grid steps when
    N >= 2 so v7x's two TensorCores both get work."""
    per_sample = 4 * lpad * (2 * cin_p + 9 * cin_p + 3 * cmax)   # rough bytes
    budget = 12 * 1024 * 1024
    bt = max(1, min(n, budget // max(per_sample, 1)))
    while bt > 1 and n // bt < 2:
        bt -= 1
    while n % bt:                                    # TODO(synk): ragged tail
        bt -= 1
    return bt


@jax.jit
def double_conv(x, params):
    """(Conv2d 3x3 p=1 -> BN -> LeakyReLU) x 2 on NCHW input x."""
    N, cin, H, W = x.shape
    w1, b1 = params["conv1"]["w"], params["conv1"]["b"]
    w2, b2 = params["conv2"]["w"], params["conv2"]["b"]
    mid, cout = w1.shape[0], w2.shape[0]

    Hp, Wp = H + 2, W + 2
    L = Hp * Wp
    Lpad = _round128(L)
    cin_p, mid_p = _round8(cin), _round8(mid)
    count = float(N * H * W)

    bt = _pick_b_tile(N, max(cin_p, mid_p), max(mid, cout), Lpad)
    G = N // bt
    LB = bt * Lpad

    # Zero-pad spatially (and channels to x8), flatten the padded grid
    # (row-major => free reshape), pad lanes to x128, fold bt samples into
    # the lane dim: (G, Cin_p, bt*Lpad).
    xp = jnp.pad(x.astype(jnp.float32),
                 ((0, 0), (0, cin_p - cin), (1, 1), (1, 1))).reshape(N, cin_p, L)
    xp = jnp.pad(xp, ((0, 0), (0, 0), (0, Lpad - L)))
    xp = xp.reshape(G, bt, cin_p, Lpad).transpose(0, 2, 1, 3).reshape(G, cin_p, LB)

    mask = jnp.zeros((Hp, Wp), jnp.float32).at[1:-1, 1:-1].set(1.0).reshape(L)
    mask = jnp.pad(mask, (0, Lpad - L))
    mask = jnp.tile(mask, (bt,)).reshape(1, LB)

    w9_1 = _pack_w9(w1)                              # (mid,  9*cin_p)
    w9_2 = _pack_w9(w2)                              # (cout, 9*mid_p)

    ones_in = jnp.ones((cin_p, 1), jnp.float32)
    zeros_in = jnp.zeros((cin_p, 1), jnp.float32)

    # Layer 1: conv (+ fused bias + fused BN1-stat partials).
    y1, s1, q1 = conv3x3_bn_stats(xp, w9_1, b1.reshape(mid, 1),
                                  ones_in, zeros_in, mask, wp=Wp, pre_act=False)
    scale1, shift1 = _bn_scale_shift(jnp.sum(s1, axis=0), jnp.sum(q1, axis=0),
                                     params["bn1_g"], params["bn1_b"], count)

    # Layer 2: BN1 affine + LeakyReLU fused onto the conv input, conv,
    # BN2-stat partials.  (Channel padding is a no-op when mid % 8 == 0.)
    y1p = jnp.pad(y1, ((0, 0), (0, mid_p - mid), (0, 0)))
    scale1p = jnp.pad(scale1, ((0, mid_p - mid), (0, 0)))
    shift1p = jnp.pad(shift1, ((0, mid_p - mid), (0, 0)))
    y2, s2, q2 = conv3x3_bn_stats(y1p, w9_2, b2.reshape(cout, 1),
                                  scale1p, shift1p, mask, wp=Wp, pre_act=True)
    scale2, shift2 = _bn_scale_shift(jnp.sum(s2, axis=0), jnp.sum(q2, axis=0),
                                     params["bn2_g"], params["bn2_b"], count)

    # Final BN2 affine + LeakyReLU + interior crop + NCHW restore: one XLA
    # elementwise+slice fusion (single read of y2, single write of the cropped
    # output) -- cheaper than a Pallas epilogue plus a separate crop pass.
    v = y2 * scale2[None] + shift2[None]
    v = jnp.where(v >= 0, v, 0.01 * v)
    v = v.reshape(G, cout, bt, Lpad)[..., :L].reshape(G, cout, bt, Hp, Wp)
    v = v[..., 1:-1, 1:-1]
    return v.transpose(0, 2, 1, 3, 4).reshape(N, cout, H, W)


# --------------------------- parameters & reference --------------------------

def init_params(key, cin, mid, cout):
    k1, k2, k3, k4 = jax.random.split(key, 4)
    return {
        "conv1": {"w": 0.1 * jax.random.normal(k1, (mid, cin, 3, 3), jnp.float32),
                  "b": 0.05 * jax.random.normal(k2, (mid,), jnp.float32)},
        "conv2": {"w": 0.1 * jax.random.normal(k3, (cout, mid, 3, 3), jnp.float32),
                  "b": 0.05 * jax.random.normal(k4, (cout,), jnp.float32)},
        "bn1_g": jnp.ones((mid, 1), jnp.float32),
        "bn1_b": jnp.zeros((mid, 1), jnp.float32),
        "bn2_g": jnp.ones((cout, 1), jnp.float32),
        "bn2_b": jnp.zeros((cout, 1), jnp.float32),
    }


def ref_double_conv(x, params, eps=1e-5):
    """Plain-JAX reference (matches the PyTorch module in training mode)."""
    def conv(inp, w, b):
        y = jax.lax.conv_general_dilated(
            inp, w, window_strides=(1, 1), padding=((1, 1), (1, 1)),
            dimension_numbers=("NCHW", "OIHW", "NCHW"))
        return y + b.reshape(1, -1, 1, 1)

    def bn_act(y, g, b):
        mean = jnp.mean(y, axis=(0, 2, 3), keepdims=True)
        var = jnp.mean((y - mean) ** 2, axis=(0, 2, 3), keepdims=True)
        yn = (y - mean) / jnp.sqrt(var + eps)
        yn = yn * g.reshape(1, -1, 1, 1) + b.reshape(1, -1, 1, 1)
        return jnp.where(yn >= 0, yn, 0.01 * yn)

    y = bn_act(conv(x, params["conv1"]["w"], params["conv1"]["b"]),
               params["bn1_g"], params["bn1_b"])
    y = bn_act(conv(y, params["conv2"]["w"], params["conv2"]["b"]),
               params["bn2_g"], params["bn2_b"])
    return y


# ------------------------------------ main -----------------------------------

if __name__ == "__main__":
    N, Cin, H, W = 2, 4, 16, 16
    MID = OUT = 32

    key = jax.random.PRNGKey(0)
    kx, kp = jax.random.split(key)
    x = jax.random.normal(kx, (N, Cin, H, W), jnp.float32)
    params = init_params(kp, Cin, MID, OUT)

    out = jax.block_until_ready(double_conv(x, params))

    assert out.shape == (N, OUT, H, W)
    assert bool(jnp.all(jnp.isfinite(out)))

    ref = jax.block_until_ready(ref_double_conv(x, params))
    max_err = float(jnp.max(jnp.abs(out - ref)))
    assert max_err < 1e-3, f"mismatch vs reference: max abs err = {max_err}"

    print("KERNEL_OK")
</pallas_src>

<mosaic_0001>
module attributes {stable_mosaic.version = 11 : i64} {
  func.func @_conv3x3_kernel(%arg0: i32, %arg1: memref<1x8x384xf32, #tpu.memory_space<vmem>>, %arg2: memref<32x72xf32, #tpu.memory_space<vmem>>, %arg3: memref<32x1xf32, #tpu.memory_space<vmem>>, %arg4: memref<8x1xf32, #tpu.memory_space<vmem>>, %arg5: memref<8x1xf32, #tpu.memory_space<vmem>>, %arg6: memref<1x384xf32, #tpu.memory_space<vmem>>, %arg7: memref<1x32x384xf32, #tpu.memory_space<vmem>>, %arg8: memref<1x32x1xf32, #tpu.memory_space<vmem>>, %arg9: memref<1x32x1xf32, #tpu.memory_space<vmem>>) attributes {dimension_semantics = [#tpu.dimension_semantics<parallel>], iteration_bounds = array<i64: 2>, scalar_prefetch = 0 : i64, scratch_operands = 0 : i64, tpu.core_type = #tpu.core_type<tc>, window_params = [{transform_indices = @transform_0, window_bounds = array<i64: 1, 8, 384>}, {pipeline_mode = #tpu.pipeline_mode<synchronous>, transform_indices = @transform_1, window_bounds = array<i64: 32, 72>}, {pipeline_mode = #tpu.pipeline_mode<synchronous>, transform_indices = @transform_2, window_bounds = array<i64: 32, 1>}, {pipeline_mode = #tpu.pipeline_mode<synchronous>, transform_indices = @transform_3, window_bounds = array<i64: 8, 1>}, {pipeline_mode = #tpu.pipeline_mode<synchronous>, transform_indices = @transform_4, window_bounds = array<i64: 8, 1>}, {pipeline_mode = #tpu.pipeline_mode<synchronous>, transform_indices = @transform_5, window_bounds = array<i64: 1, 384>}, {transform_indices = @transform_6, window_bounds = array<i64: 1, 32, 384>}, {transform_indices = @transform_7, window_bounds = array<i64: 1, 32, 1>}, {transform_indices = @transform_8, window_bounds = array<i64: 1, 32, 1>}]} {
    %c0 = arith.constant 0 : index
    %c0_0 = arith.constant 0 : index
    %c0_1 = arith.constant 0 : index
    %0 = vector.load %arg1[%c0, %c0_0, %c0_1] : memref<1x8x384xf32, #tpu.memory_space<vmem>>, vector<1x8x384xf32>
    %1 = vector.shape_cast %0 : vector<1x8x384xf32> to vector<8x384xf32>
    %c19_i32 = arith.constant 19 : i32
    %2 = tpu.dynamic_rotate %1 by %c19_i32 dim 1 : vector<8x384xf32>, i32 -> vector<8x384xf32>
    %c18_i32 = arith.constant 18 : i32
    %3 = tpu.dynamic_rotate %1 by %c18_i32 dim 1 : vector<8x384xf32>, i32 -> vector<8x384xf32>
    %c17_i32 = arith.constant 17 : i32
    %4 = tpu.dynamic_rotate %1 by %c17_i32 dim 1 : vector<8x384xf32>, i32 -> vector<8x384xf32>
    %c1_i32 = arith.constant 1 : i32
    %5 = tpu.dynamic_rotate %1 by %c1_i32 dim 1 : vector<8x384xf32>, i32 -> vector<8x384xf32>
    %c383_i32 = arith.constant 383 : i32
    %6 = tpu.dynamic_rotate %1 by %c383_i32 dim 1 : vector<8x384xf32>, i32 -> vector<8x384xf32>
    %c367_i32 = arith.constant 367 : i32
    %7 = tpu.dynamic_rotate %1 by %c367_i32 dim 1 : vector<8x384xf32>, i32 -> vector<8x384xf32>
    %c366_i32 = arith.constant 366 : i32
    %8 = tpu.dynamic_rotate %1 by %c366_i32 dim 1 : vector<8x384xf32>, i32 -> vector<8x384xf32>
    %c365_i32 = arith.constant 365 : i32
    %9 = tpu.dynamic_rotate %1 by %c365_i32 dim 1 : vector<8x384xf32>, i32 -> vector<8x384xf32>
    %10 = tpu.concatenate %2, %3, %4, %5, %1, %6, %7, %8, %9 in 0 : vector<8x384xf32>, vector<8x384xf32>, vector<8x384xf32>, vector<8x384xf32>, vector<8x384xf32>, vector<8x384xf32>, vector<8x384xf32>, vector<8x384xf32>, vector<8x384xf32> -> vector<72x384xf32>
    %c0_2 = arith.constant 0 : index
    %c0_3 = arith.constant 0 : index
    %11 = vector.load %arg2[%c0_2, %c0_3] : memref<32x72xf32, #tpu.memory_space<vmem>>, vector<32x72xf32>
    %cst = arith.constant dense<0.000000e+00> : vector<32x384xf32>
    %12 = tpu.matmul %11, %10, %cst {dimension_numbers = #tpu.dot_dimension_numbers<[1], [0], [0], [1], [0, 0, 1, 1], [], []>} : vector<32x72xf32>, vector<72x384xf32>, vector<32x384xf32> -> vector<32x384xf32>
    %c0_4 = arith.constant 0 : index
    %c0_5 = arith.constant 0 : index
    %13 = vector.load %arg3[%c0_4, %c0_5] : memref<32x1xf32, #tpu.memory_space<vmem>>, vector<32x1xf32>
    %14 = vector.broadcast %13 : vector<32x1xf32> to vector<32x384xf32>
    %15 = arith.addf %12, %14 : vector<32x384xf32>
    %c0_6 = arith.constant 0 : index
    %c0_7 = arith.constant 0 : index
    %c0_8 = arith.constant 0 : index
    %16 = vector.load %arg7[%c0_6, %c0_7, %c0_8] : memref<1x32x384xf32, #tpu.memory_space<vmem>>, vector<1x32x384xf32>
    %17 = vector.shape_cast %16 : vector<1x32x384xf32> to vector<32x384xf32>
    %18 = vector.shape_cast %15 : vector<32x384xf32> to vector<1x32x384xf32>
    tpu.vector_store %arg7[%c0_6, %c0_7, %c0_8], %18 {strides = array<i32>} : memref<1x32x384xf32, #tpu.memory_space<vmem>>, vector<1x32x384xf32>,
    %c0_9 = arith.constant 0 : index
    %c0_10 = arith.constant 0 : index
    %19 = vector.load %arg6[%c0_9, %c0_10] : memref<1x384xf32, #tpu.memory_space<vmem>>, vector<1x384xf32>
    %20 = vector.broadcast %19 : vector<1x384xf32> to vector<32x384xf32>
    %21 = arith.mulf %15, %20 : vector<32x384xf32>
    %cst_11 = arith.constant dense<0.000000e+00> : vector<32xf32>
    %22 = vector.multi_reduction <add>, %21, %cst_11 [1] : vector<32x384xf32> to vector<32xf32>
    %23 = vector.shape_cast %22 : vector<32xf32> to vector<32x1xf32>
    %c0_12 = arith.constant 0 : index
    %c0_13 = arith.constant 0 : index
    %c0_14 = arith.constant 0 : index
    %24 = vector.load %arg8[%c0_12, %c0_13, %c0_14] : memref<1x32x1xf32, #tpu.memory_space<vmem>>, vector<1x32x1xf32>
    %25 = vector.shape_cast %24 : vector<1x32x1xf32> to vector<32x1xf32>
    %26 = vector.shape_cast %23 : vector<32x1xf32> to vector<1x32x1xf32>
    tpu.vector_store %arg8[%c0_12, %c0_13, %c0_14], %26 {strides = array<i32>} : memref<1x32x1xf32, #tpu.memory_space<vmem>>, vector<1x32x1xf32>,
    %27 = arith.mulf %21, %21 : vector<32x384xf32>
    %cst_15 = arith.constant dense<0.000000e+00> : vector<32xf32>
    %28 = vector.multi_reduction <add>, %27, %cst_15 [1] : vector<32x384xf32> to vector<32xf32>
    %29 = vector.shape_cast %28 : vector<32xf32> to vector<32x1xf32>
    %c0_16 = arith.constant 0 : index
    %c0_17 = arith.constant 0 : index
    %c0_18 = arith.constant 0 : index
    %30 = vector.load %arg9[%c0_16, %c0_17, %c0_18] : memref<1x32x1xf32, #tpu.memory_space<vmem>>, vector<1x32x1xf32>
    %31 = vector.shape_cast %30 : vector<1x32x1xf32> to vector<32x1xf32>
    %32 = vector.shape_cast %29 : vector<32x1xf32> to vector<1x32x1xf32>
    tpu.vector_store %arg9[%c0_16, %c0_17, %c0_18], %32 {strides = array<i32>} : memref<1x32x1xf32, #tpu.memory_space<vmem>>, vector<1x32x1xf32>,
    return
  }
  func.func @transform_0(%arg0: i32) -> (i32, i32, i32) {
    %c0_i32 = arith.constant 0 : i32
    %c0_i32_0 = arith.constant 0 : i32
    %c0_i32_1 = arith.constant 0 : i32
    return %arg0, %c0_i32, %c0_i32_0 : i32, i32, i32
  }
  func.func @transform_1(%arg0: i32) -> (i32, i32) {
    %c0_i32 = arith.constant 0 : i32
    %c0_i32_0 = arith.constant 0 : i32
    %c0_i32_1 = arith.constant 0 : i32
    return %c0_i32, %c0_i32_0 : i32, i32
  }
  func.func @transform_2(%arg0: i32) -> (i32, i32) {
    %c0_i32 = arith.constant 0 : i32
    %c0_i32_0 = arith.constant 0 : i32
    %c0_i32_1 = arith.constant 0 : i32
    return %c0_i32, %c0_i32_0 : i32, i32
  }
  func.func @transform_3(%arg0: i32) -> (i32, i32) {
    %c0_i32 = arith.constant 0 : i32
    %c0_i32_0 = arith.constant 0 : i32
    %c0_i32_1 = arith.constant 0 : i32
    return %c0_i32, %c0_i32_0 : i32, i32
  }
  func.func @transform_4(%arg0: i32) -> (i32, i32) {
    %c0_i32 = arith.constant 0 : i32
    %c0_i32_0 = arith.constant 0 : i32
    %c0_i32_1 = arith.constant 0 : i32
    return %c0_i32, %c0_i32_0 : i32, i32
  }
  func.func @transform_5(%arg0: i32) -> (i32, i32) {
    %c0_i32 = arith.constant 0 : i32
    %c0_i32_0 = arith.constant 0 : i32
    %c0_i32_1 = arith.constant 0 : i32
    return %c0_i32, %c0_i32_0 : i32, i32
  }
  func.func @transform_6(%arg0: i32) -> (i32, i32, i32) {
    %c0_i32 = arith.constant 0 : i32
    %c0_i32_0 = arith.constant 0 : i32
    %c0_i32_1 = arith.constant 0 : i32
    return %arg0, %c0_i32, %c0_i32_0 : i32, i32, i32
  }
  func.func @transform_7(%arg0: i32) -> (i32, i32, i32) {
    %c0_i32 = arith.constant 0 : i32
    %c0_i32_0 = arith.constant 0 : i32
    %c0_i32_1 = arith.constant 0 : i32
    return %arg0, %c0_i32, %c0_i32_0 : i32, i32, i32
  }
  func.func @transform_8(%arg0: i32) -> (i32, i32, i32) {
    %c0_i32 = arith.constant 0 : i32
    %c0_i32_0 = arith.constant 0 : i32
    %c0_i32_1 = arith.constant 0 : i32
    return %arg0, %c0_i32, %c0_i32_0 : i32, i32, i32
  }
}

module attributes {stable_mosaic.version = 11 : i64} {
  func.func @_conv3x3_kernel(%arg0: i32, %arg1: memref<1x32x384xf32, #tpu.memory_space<vmem>>, %arg2: memref<32x288xf32, #tpu.memory_space<vmem>>, %arg3: memref<32x1xf32, #tpu.memory_space<vmem>>, %arg4: memref<32x1xf32, #tpu.memory_space<vmem>>, %arg5: memref<32x1xf32, #tpu.memory_space<vmem>>, %arg6: memref<1x384xf32, #tpu.memory_space<vmem>>, %arg7: memref<1x32x384xf32, #tpu.memory_space<vmem>>, %arg8: memref<1x32x1xf32, #tpu.memory_space<vmem>>, %arg9: memref<1x32x1xf32, #tpu.memory_space<vmem>>) attributes {dimension_semantics = [#tpu.dimension_semantics<parallel>], iteration_bounds = array<i64: 2>, scalar_prefetch = 0 : i64, scratch_operands = 0 : i64, tpu.core_type = #tpu.core_type<tc>, window_params = [{transform_indices = @transform_0, window_bounds = array<i64: 1, 32, 384>}, {pipeline_mode = #tpu.pipeline_mode<synchronous>, transform_indices = @transform_1, window_bounds = array<i64: 32, 288>}, {pipeline_mode = #tpu.pipeline_mode<synchronous>, transform_indices = @transform_2, window_bounds = array<i64: 32, 1>}, {pipeline_mode = #tpu.pipeline_mode<synchronous>, transform_indices = @transform_3, window_bounds = array<i64: 32, 1>}, {pipeline_mode = #tpu.pipeline_mode<synchronous>, transform_indices = @transform_4, window_bounds = array<i64: 32, 1>}, {pipeline_mode = #tpu.pipeline_mode<synchronous>, transform_indices = @transform_5, window_bounds = array<i64: 1, 384>}, {transform_indices = @transform_6, window_bounds = array<i64: 1, 32, 384>}, {transform_indices = @transform_7, window_bounds = array<i64: 1, 32, 1>}, {transform_indices = @transform_8, window_bounds = array<i64: 1, 32, 1>}]} {
    %c0 = arith.constant 0 : index
    %c0_0 = arith.constant 0 : index
    %c0_1 = arith.constant 0 : index
    %0 = vector.load %arg1[%c0, %c0_0, %c0_1] : memref<1x32x384xf32, #tpu.memory_space<vmem>>, vector<1x32x384xf32>
    %1 = vector.shape_cast %0 : vector<1x32x384xf32> to vector<32x384xf32>
    %c0_2 = arith.constant 0 : index
    %c0_3 = arith.constant 0 : index
    %2 = vector.load %arg4[%c0_2, %c0_3] : memref<32x1xf32, #tpu.memory_space<vmem>>, vector<32x1xf32>
    %3 = vector.broadcast %2 : vector<32x1xf32> to vector<32x384xf32>
    %4 = arith.mulf %1, %3 : vector<32x384xf32>
    %c0_4 = arith.constant 0 : index
    %c0_5 = arith.constant 0 : index
    %5 = vector.load %arg5[%c0_4, %c0_5] : memref<32x1xf32, #tpu.memory_space<vmem>>, vector<32x1xf32>
    %6 = vector.broadcast %5 : vector<32x1xf32> to vector<32x384xf32>
    %7 = arith.addf %4, %6 : vector<32x384xf32>
    %cst = arith.constant 0.000000e+00 : f32
    %8 = vector.broadcast %cst : f32 to vector<32x384xf32>
    %9 = arith.cmpf oge, %7, %8 : vector<32x384xf32>
    %cst_6 = arith.constant 0.00999999977 : f32
    %10 = vector.broadcast %cst_6 : f32 to vector<32x384xf32>
    %11 = arith.mulf %10, %7 : vector<32x384xf32>
    %12 = arith.select %9, %7, %11 : vector<32x384xi1>, vector<32x384xf32>
    %c0_7 = arith.constant 0 : index
    %c0_8 = arith.constant 0 : index
    %13 = vector.load %arg6[%c0_7, %c0_8] : memref<1x384xf32, #tpu.memory_space<vmem>>, vector<1x384xf32>
    %14 = vector.broadcast %13 : vector<1x384xf32> to vector<32x384xf32>
    %15 = arith.mulf %12, %14 : vector<32x384xf32>
    %c19_i32 = arith.constant 19 : i32
    %16 = tpu.dynamic_rotate %15 by %c19_i32 dim 1 : vector<32x384xf32>, i32 -> vector<32x384xf32>
    %c18_i32 = arith.constant 18 : i32
    %17 = tpu.dynamic_rotate %15 by %c18_i32 dim 1 : vector<32x384xf32>, i32 -> vector<32x384xf32>
    %c17_i32 = arith.constant 17 : i32
    %18 = tpu.dynamic_rotate %15 by %c17_i32 dim 1 : vector<32x384xf32>, i32 -> vector<32x384xf32>
    %c1_i32 = arith.constant 1 : i32
    %19 = tpu.dynamic_rotate %15 by %c1_i32 dim 1 : vector<32x384xf32>, i32 -> vector<32x384xf32>
    %c383_i32 = arith.constant 383 : i32
    %20 = tpu.dynamic_rotate %15 by %c383_i32 dim 1 : vector<32x384xf32>, i32 -> vector<32x384xf32>
    %c367_i32 = arith.constant 367 : i32
    %21 = tpu.dynamic_rotate %15 by %c367_i32 dim 1 : vector<32x384xf32>, i32 -> vector<32x384xf32>
    %c366_i32 = arith.constant 366 : i32
    %22 = tpu.dynamic_rotate %15 by %c366_i32 dim 1 : vector<32x384xf32>, i32 -> vector<32x384xf32>
    %c365_i32 = arith.constant 365 : i32
    %23 = tpu.dynamic_rotate %15 by %c365_i32 dim 1 : vector<32x384xf32>, i32 -> vector<32x384xf32>
    %24 = tpu.concatenate %16, %17, %18, %19, %15, %20, %21, %22, %23 in 0 : vector<32x384xf32>, vector<32x384xf32>, vector<32x384xf32>, vector<32x384xf32>, vector<32x384xf32>, vector<32x384xf32>, vector<32x384xf32>, vector<32x384xf32>, vector<32x384xf32> -> vector<288x384xf32>
    %c0_9 = arith.constant 0 : index
    %c0_10 = arith.constant 0 : index
    %25 = vector.load %arg2[%c0_9, %c0_10] : memref<32x288xf32, #tpu.memory_space<vmem>>, vector<32x288xf32>
    %cst_11 = arith.constant dense<0.000000e+00> : vector<32x384xf32>
    %26 = tpu.matmul %25, %24, %cst_11 {dimension_numbers = #tpu.dot_dimension_numbers<[1], [0], [0], [1], [0, 0, 1, 1], [], []>} : vector<32x288xf32>, vector<288x384xf32>, vector<32x384xf32> -> vector<32x384xf32>
    %c0_12 = arith.constant 0 : index
    %c0_13 = arith.constant 0 : index
    %27 = vector.load %arg3[%c0_12, %c0_13] : memref<32x1xf32, #tpu.memory_space<vmem>>, vector<32x1xf32>
    %28 = vector.broadcast %27 : vector<32x1xf32> to vector<32x384xf32>
    %29 = arith.addf %26, %28 : vector<32x384xf32>
    %c0_14 = arith.constant 0 : index
    %c0_15 = arith.constant 0 : index
    %c0_16 = arith.constant 0 : index
    %30 = vector.load %arg7[%c0_14, %c0_15, %c0_16] : memref<1x32x384xf32, #tpu.memory_space<vmem>>, vector<1x32x384xf32>
    %31 = vector.shape_cast %30 : vector<1x32x384xf32> to vector<32x384xf32>
    %32 = vector.shape_cast %29 : vector<32x384xf32> to vector<1x32x384xf32>
    tpu.vector_store %arg7[%c0_14, %c0_15, %c0_16], %32 {strides = array<i32>} : memref<1x32x384xf32, #tpu.memory_space<vmem>>, vector<1x32x384xf32>,
    %c0_17 = arith.constant 0 : index
    %c0_18 = arith.constant 0 : index
    %33 = vector.load %arg6[%c0_17, %c0_18] : memref<1x384xf32, #tpu.memory_space<vmem>>, vector<1x384xf32>
    %34 = vector.broadcast %33 : vector<1x384xf32> to vector<32x384xf32>
    %35 = arith.mulf %29, %34 : vector<32x384xf32>
    %cst_19 = arith.constant dense<0.000000e+00> : vector<32xf32>
    %36 = vector.multi_reduction <add>, %35, %cst_19 [1] : vector<32x384xf32> to vector<32xf32>
    %37 = vector.shape_cast %36 : vector<32xf32> to vector<32x1xf32>
    %c0_20 = arith.constant 0 : index
    %c0_21 = arith.constant 0 : index
    %c0_22 = arith.constant 0 : index
    %38 = vector.load %arg8[%c0_20, %c0_21, %c0_22] : memref<1x32x1xf32, #tpu.memory_space<vmem>>, vector<1x32x1xf32>
    %39 = vector.shape_cast %38 : vector<1x32x1xf32> to vector<32x1xf32>
    %40 = vector.shape_cast %37 : vector<32x1xf32> to vector<1x32x1xf32>
    tpu.vector_store %arg8[%c0_20, %c0_21, %c0_22], %40 {strides = array<i32>} : memref<1x32x1xf32, #tpu.memory_space<vmem>>, vector<1x32x1xf32>,
    %41 = arith.mulf %35, %35 : vector<32x384xf32>
    %cst_23 = arith.constant dense<0.000000e+00> : vector<32xf32>
    %42 = vector.multi_reduction <add>, %41, %cst_23 [1] : vector<32x384xf32> to vector<32xf32>
    %43 = vector.shape_cast %42 : vector<32xf32> to vector<32x1xf32>
    %c0_24 = arith.constant 0 : index
    %c0_25 = arith.constant 0 : index
    %c0_26 = arith.constant 0 : index
    %44 = vector.load %arg9[%c0_24, %c0_25, %c0_26] : memref<1x32x1xf32, #tpu.memory_space<vmem>>, vector<1x32x1xf32>
    %45 = vector.shape_cast %44 : vector<1x32x1xf32> to vector<32x1xf32>
    %46 = vector.shape_cast %43 : vector<32x1xf32> to vector<1x32x1xf32>
    tpu.vector_store %arg9[%c0_24, %c0_25, %c0_26], %46 {strides = array<i32>} : memref<1x32x1xf32, #tpu.memory_space<vmem>>, vector<1x32x1xf32>,
    return
  }
  func.func @transform_0(%arg0: i32) -> (i32, i32, i32) {
    %c0_i32 = arith.constant 0 : i32
    %c0_i32_0 = arith.constant 0 : i32
    %c0_i32_1 = arith.constant 0 : i32
    return %arg0, %c0_i32, %c0_i32_0 : i32, i32, i32
  }
  func.func @transform_1(%arg0: i32) -> (i32, i32) {
    %c0_i32 = arith.constant 0 : i32
    %c0_i32_0 = arith.constant 0 : i32
    %c0_i32_1 = arith.constant 0 : i32
    return %c0_i32, %c0_i32_0 : i32, i32
  }
  func.func @transform_2(%arg0: i32) -> (i32, i32) {
    %c0_i32 = arith.constant 0 : i32
    %c0_i32_0 = arith.constant 0 : i32
    %c0_i32_1 = arith.constant 0 : i32
    return %c0_i32, %c0_i32_0 : i32, i32
  }
  func.func @transform_3(%arg0: i32) -> (i32, i32) {
    %c0_i32 = arith.constant 0 : i32
    %c0_i32_0 = arith.constant 0 : i32
    %c0_i32_1 = arith.constant 0 : i32
    return %c0_i32, %c0_i32_0 : i32, i32
  }
  func.func @transform_4(%arg0: i32) -> (i32, i32) {
    %c0_i32 = arith.constant 0 : i32
    %c0_i32_0 = arith.constant 0 : i32
    %c0_i32_1 = arith.constant 0 : i32
    return %c0_i32, %c0_i32_0 : i32, i32
  }
  func.func @transform_5(%arg0: i32) -> (i32, i32) {
    %c0_i32 = arith.constant 0 : i32
    %c0_i32_0 = arith.constant 0 : i32
    %c0_i32_1 = arith.constant 0 : i32
    return %c0_i32, %c0_i32_0 : i32, i32
  }
  func.func @transform_6(%arg0: i32) -> (i32, i32, i32) {
    %c0_i32 = arith.constant 0 : i32
    %c0_i32_0 = arith.constant 0 : i32
    %c0_i32_1 = arith.constant 0 : i32
    return %arg0, %c0_i32, %c0_i32_0 : i32, i32, i32
  }
  func.func @transform_7(%arg0: i32) -> (i32, i32, i32) {
    %c0_i32 = arith.constant 0 : i32
    %c0_i32_0 = arith.constant 0 : i32
    %c0_i32_1 = arith.constant 0 : i32
    return %arg0, %c0_i32, %c0_i32_0 : i32, i32, i32
  }
  func.func @transform_8(%arg0: i32) -> (i32, i32, i32) {
    %c0_i32 = arith.constant 0 : i32
    %c0_i32_0 = arith.constant 0 : i32
    %c0_i32_1 = arith.constant 0 : i32
    return %arg0, %c0_i32, %c0_i32_0 : i32, i32, i32
  }
}

</mosaic_0001>

<llo_original>
// kernel: tile.1
$region0: #{tile.1}
  #allocation0 [shape = 's32[1]{0}', space=sflag, size = 0x4, scoped, tag = 'scoped memory for tile.1']
  %s0 = inlined_call_operand.vmem [shape: f32[384], index: 0, kind: input, shape index: {}]
  %s1 = inlined_call_operand.vmem [shape: f32[1,384], index: 1, kind: output, shape index: {}]
  // Predicated region
  $region2: #{tile.1} parent=0 // pred_check
    _
  $region3: #{tile.1} parent=0 // pred_check_branch
    %3 = sbr.rel (0) target = $region5
  $region4: #{tile.1} parent=0 // pred_region
    _
  $region5: #{tile.1} parent=0 // pred_fallthru
    _
  %v4 = vld [vmem:[%s0] ss:$0 sm:$0xff]
  %5 = vst [vmem:[%s1] sm:$0x1] %v4
  %s6 = scalar_lea.vmem %s0, 1
  %v7 = vld [vmem:[%s6] ss:$0 sm:$0xff]
  %s8 = scalar_lea.vmem %s1, 1
  %9 = vst [vmem:[%s8] sm:$0x1] %v7
  %s10 = scalar_lea.vmem %s0, 2
  %v11 = vld [vmem:[%s10] ss:$0 sm:$0xff]
  %s12 = scalar_lea.vmem %s1, 2
  %13 = vst [vmem:[%s12] sm:$0x1] %v11

// kernel: double_conv.2
$region0: #{double_conv.2}
  #allocation0 [shape = 'u32[]', space=smem, size = 0x4, offset = 0x4, fixed_abs, tag = 'smem constant byte address 0x4 - core index']
  #allocation1 [shape = 'u32[144,128]{1,0:T(1,128)}', space=vmem, size = 0x12000, scoped, tag = 'internal scratch']
  %s0 = inlined_call_operand.vmem [shape: f32[2,8,384], index: 0, kind: input, shape index: {}]
  %s1 = inlined_call_operand.vmem [shape: f32[32,72], index: 1, kind: input, shape index: {}]
  %s2 = inlined_call_operand.vmem [shape: f32[32,1], index: 2, kind: input, shape index: {}]
  %s3 = inlined_call_operand.vmem [shape: f32[8,1], index: 3, kind: input, shape index: {}]
  %s4 = inlined_call_operand.vmem [shape: f32[8,1], index: 4, kind: input, shape index: {}]
  %s5 = inlined_call_operand.vmem [shape: f32[1,384], index: 5, kind: input, shape index: {}]
  %s6 = inlined_call_operand.vmem [shape: f32[2,32,384], index: 6, kind: output, shape index: {0}]
  %s7 = inlined_call_operand.vmem [shape: f32[2,32,1], index: 7, kind: output, shape index: {1}]
  %s8 = inlined_call_operand.vmem [shape: f32[2,32,1], index: 8, kind: output, shape index: {2}]
  %9 = xla_tuple %s6, %s7, %s8
  %s10 = sld [smem:[#allocation0]]
  $region73: #{double_conv.2} parent=0
    _
  %s12 = ssub.s32 1, %s10
  %s13 = scalar_select 0, %s12, %s10
  loop: start=0, step=1, limit=4
  $region2: #{double_conv.2} parent=0 // loop_pre_header
    _
  $region3: #{double_conv.2} parent=0 // loop_header
    %s15 = sphi 0, %s19
    %p16 = scmp.ge.s32.totalorder %s15, 4
    %s25 = sphi 0, %s27
    %s28 = sphi 0, %s25
    %s29 = sphi 0, %s28
    %s45 = sphi 0, %s29
    %s49 = sphi 0, %s49
    %s51 = sphi 0, %s49
    %s52 = sphi 0, %s51
    %s66 = sphi 0, %s52
    %s70 = sphi 0, %s70
    %s72 = sphi 0, %s70
    %s73 = sphi 0, %s72
    %s87 = sphi 0, %s73
    %s91 = sphi 0, %s91
    %s93 = sphi 0, %s91
    %s94 = sphi 0, %s93
    %s108 = sphi 0, %s94
    %s112 = sphi 0, %s112
    %s114 = sphi 0, %s112
    %s115 = sphi 0, %s114
    %s129 = sphi 0, %s115
    %s133 = sphi 0, %s133
    %s135 = sphi 0, %s133
    %s136 = sphi 0, %s135
    %s150 = sphi 0, %s136
    %s156 = sphi 0, %s158
    %s159 = sphi 0, %s156
    %s160 = sphi 0, %s159
    %s176 = sphi 0, %s160
    %s182 = sphi 0, %s184
    %s185 = sphi 0, %s182
    %s186 = sphi 0, %s185
    %s202 = sphi 0, %s186
    %s208 = sphi 0, %s210
    %s211 = sphi 0, %s208
    %s212 = sphi 0, %s211
    %s228 = sphi 0, %s212
  $region4: #{double_conv.2} parent=0 // loop_header_branch
    %18 = sbr.rel (%p16) target = $region8
  $region5: #{double_conv.2} parent=0 // loop_body
    %s20 = ssub.s32 %s15, 1
    %s21 = ssub.s32 %s15, 2
    %s22 = sadd.s32 %s15, 1
    %s23 = ssub.s32 %s15, %s22
    %p24 = scmp.eq.s32.totalorder %s23, 0
    %s26 = sadd.s32 %s25, 1
    %s27 = scalar_select %p24, %s25, %s26
    %p30 = pneg %p24
    %p31 = scmp.eq.s32.totalorder %s15, 1
    %p32 = por %p30, %p31
    %p33 = scmp.ne.s32.totalorder %s25, %s28
    %p34 = scmp.eq.s32.totalorder %s15, 0
    %p35 = por %p33, %p34
    %p36 = scmp.ne.s32.totalorder %s25, %s28
    %p37 = scmp.eq.s32.totalorder %s20, 1
    %p38 = por %p36, %p37
    %p39 = scmp.ne.s32.totalorder %s28, %s29
    %p40 = scmp.eq.s32.totalorder %s20, 0
    %p41 = por %p39, %p40
    %p42 = scmp.ne.s32.totalorder %s28, %s29
    %p43 = scmp.eq.s32.totalorder %s21, 1
    %p44 = por %p42, %p43
    %p46 = scmp.ne.s32.totalorder %s29, %s45
    %p47 = scmp.eq.s32.totalorder %s21, 0
    %p48 = por %p46, %p47
    %s50 = sadd.s32 %s49, 1
    %p53 = scmp.eq.s32.totalorder %s15, 1
    %p54 = scmp.ne.s32.totalorder %s49, %s51
    %p55 = scmp.eq.s32.totalorder %s15, 0
    %p56 = por %p54, %p55
    %p57 = scmp.ne.s32.totalorder %s49, %s51
    %p58 = scmp.eq.s32.totalorder %s20, 1
    %p59 = por %p57, %p58
    %p60 = scmp.ne.s32.totalorder %s51, %s52
    %p61 = scmp.eq.s32.totalorder %s20, 0
    %p62 = por %p60, %p61
    %p63 = scmp.ne.s32.totalorder %s51, %s52
    %p64 = scmp.eq.s32.totalorder %s21, 1
    %p65 = por %p63, %p64
    %p67 = scmp.ne.s32.totalorder %s52, %s66
    %p68 = scmp.eq.s32.totalorder %s21, 0
    %p69 = por %p67, %p68
    %s71 = sadd.s32 %s70, 1
    %p74 = scmp.eq.s32.totalorder %s15, 1
    %p75 = scmp.ne.s32.totalorder %s70, %s72
    %p76 = scmp.eq.s32.totalorder %s15, 0
    %p77 = por %p75, %p76
    %p78 = scmp.ne.s32.totalorder %s70, %s72
    %p79 = scmp.eq.s32.totalorder %s20, 1
    %p80 = por %p78, %p79
    %p81 = scmp.ne.s32.totalorder %s72, %s73
    %p82 = scmp.eq.s32.totalorder %s20, 0
    %p83 = por %p81, %p82
    %p84 = scmp.ne.s32.totalorder %s72, %s73
    %p85 = scmp.eq.s32.totalorder %s21, 1
    %p86 = por %p84, %p85
    %p88 = scmp.ne.s32.totalorder %s73, %s87
    %p89 = scmp.eq.s32.totalorder %s21, 0
    %p90 = por %p88, %p89
    %s92 = sadd.s32 %s91, 1
    %p95 = scmp.eq.s32.totalorder %s15, 1
    %p96 = scmp.ne.s32.totalorder %s91, %s93
    %p97 = scmp.eq.s32.totalorder %s15, 0
    %p98 = por %p96, %p97
    %p99 = scmp.ne.s32.totalorder %s91, %s93
    %p100 = scmp.eq.s32.totalorder %s20, 1
    %p101 = por %p99, %p100
    %p102 = scmp.ne.s32.totalorder %s93, %s94
    %p103 = scmp.eq.s32.totalorder %s20, 0
    %p104 = por %p102, %p103
    %p105 = scmp.ne.s32.totalorder %s93, %s94
    %p106 = scmp.eq.s32.totalorder %s21, 1
    %p107 = por %p105, %p106
    %p109 = scmp.ne.s32.totalorder %s94, %s108
    %p110 = scmp.eq.s32.totalorder %s21, 0
    %p111 = por %p109, %p110
    %s113 = sadd.s32 %s112, 1
    %p116 = scmp.eq.s32.totalorder %s15, 1
    %p117 = scmp.ne.s32.totalorder %s112, %s114
    %p118 = scmp.eq.s32.totalorder %s15, 0
    %p119 = por %p117, %p118
    %p120 = scmp.ne.s32.totalorder %s112, %s114
    %p121 = scmp.eq.s32.totalorder %s20, 1
    %p122 = por %p120, %p121
    %p123 = scmp.ne.s32.totalorder %s114, %s115
    %p124 = scmp.eq.s32.totalorder %s20, 0
    %p125 = por %p123, %p124
    %p126 = scmp.ne.s32.totalorder %s114, %s115
    %p127 = scmp.eq.s32.totalorder %s21, 1
    %p128 = por %p126, %p127
    %p130 = scmp.ne.s32.totalorder %s115, %s129
    %p131 = scmp.eq.s32.totalorder %s21, 0
    %p132 = por %p130, %p131
    %s134 = sadd.s32 %s133, 1
    %p137 = scmp.eq.s32.totalorder %s15, 1
    %p138 = scmp.ne.s32.totalorder %s133, %s135
    %p139 = scmp.eq.s32.totalorder %s15, 0
    %p140 = por %p138, %p139
    %p141 = scmp.ne.s32.totalorder %s133, %s135
    %p142 = scmp.eq.s32.totalorder %s20, 1
    %p143 = por %p141, %p142
    %p144 = scmp.ne.s32.totalorder %s135, %s136
    %p145 = scmp.eq.s32.totalorder %s20, 0
    %p146 = por %p144, %p145
    %p147 = scmp.ne.s32.totalorder %s135, %s136
    %p148 = scmp.eq.s32.totalorder %s21, 1
    %p149 = por %p147, %p148
    %p151 = scmp.ne.s32.totalorder %s136, %s150
    %p152 = scmp.eq.s32.totalorder %s21, 0
    %p153 = por %p151, %p152
    %s154 = ssub.s32 %s15, %s22
    %p155 = scmp.eq.s32.totalorder %s154, 0
    %s157 = sadd.s32 %s156, 1
    %s158 = scalar_select %p155, %s156, %s157
    %p161 = pneg %p155
    %p162 = scmp.eq.s32.totalorder %s15, 1
    %p163 = por %p161, %p162
    %p164 = scmp.ne.s32.totalorder %s156, %s159
    %p165 = scmp.eq.s32.totalorder %s15, 0
    %p166 = por %p164, %p165
    %p167 = scmp.ne.s32.totalorder %s156, %s159
    %p168 = scmp.eq.s32.totalorder %s20, 1
    %p169 = por %p167, %p168
    %p170 = scmp.ne.s32.totalorder %s159, %s160
    %p171 = scmp.eq.s32.totalorder %s20, 0
    %p172 = por %p170, %p171
    %p173 = scmp.ne.s32.totalorder %s159, %s160
    %p174 = scmp.eq.s32.totalorder %s21, 1
    %p175 = por %p173, %p174
    %p177 = scmp.ne.s32.totalorder %s160, %s176
    %p178 = scmp.eq.s32.totalorder %s21, 0
    %p179 = por %p177, %p178
    %s180 = ssub.s32 %s15, %s22
    %p181 = scmp.eq.s32.totalorder %s180, 0
    %s183 = sadd.s32 %s182, 1
    %s184 = scalar_select %p181, %s182, %s183
    %p187 = pneg %p181
    %p188 = scmp.eq.s32.totalorder %s15, 1
    %p189 = por %p187, %p188
    %p190 = scmp.ne.s32.totalorder %s182, %s185
    %p191 = scmp.eq.s32.totalorder %s15, 0
    %p192 = por %p190, %p191
    %p193 = scmp.ne.s32.totalorder %s182, %s185
    %p194 = scmp.eq.s32.totalorder %s20, 1
    %p195 = por %p193, %p194
    %p196 = scmp.ne.s32.totalorder %s185, %s186
    %p197 = scmp.eq.s32.totalorder %s20, 0
    %p198 = por %p196, %p197
    %p199 = scmp.ne.s32.totalorder %s185, %s186
    %p200 = scmp.eq.s32.totalorder %s21, 1
    %p201 = por %p199, %p200
    %p203 = scmp.ne.s32.totalorder %s186, %s202
    %p204 = scmp.eq.s32.totalorder %s21, 0
    %p205 = por %p203, %p204
    %s206 = ssub.s32 %s15, %s22
    %p207 = scmp.eq.s32.totalorder %s206, 0
    %s209 = sadd.s32 %s208, 1
    %s210 = scalar_select %p207, %s208, %s209
    %p213 = pneg %p207
    %p214 = scmp.eq.s32.totalorder %s15, 1
    %p215 = por %p213, %p214
    %p216 = scmp.ne.s32.totalorder %s208, %s211
    %p217 = scmp.eq.s32.totalorder %s15, 0
    %p218 = por %p216, %p217
    %p219 = scmp.ne.s32.totalorder %s208, %s211
    %p220 = scmp.eq.s32.totalorder %s20, 1
    %p221 = por %p219, %p220
    %p222 = scmp.ne.s32.totalorder %s211, %s212
    %p223 = scmp.eq.s32.totalorder %s20, 0
    %p224 = por %p222, %p223
    %p225 = scmp.ne.s32.totalorder %s211, %s212
    %p226 = scmp.eq.s32.totalorder %s21, 1
    %p227 = por %p225, %p226
    %p229 = scmp.ne.s32.totalorder %s212, %s228
    %p230 = scmp.eq.s32.totalorder %s21, 0
    %p231 = por %p229, %p230
    %p232 = scmp.le.s32.totalorder 1, %s15
    %p233 = scmp.lt.s32.totalorder %s15, 3
    %p234 = pnand %p232, %p233
    %p235 = pneg %p234
    // Predicated region
    $region9: #{double_conv.2} parent=5 // pred_check
      _
    $region10: #{double_conv.2} parent=5 // pred_check_branch
      %237 = sbr.rel (%p234) target = $region12
    $region11: #{double_conv.2} parent=5 // pred_region
      %s238 = ssub.s32 %s15, 1
      // Predicated region
      $region13: #{double_conv.2} parent=11 // pred_check
        %p239 = pneg %p62
      $region14: #{double_conv.2} parent=11 // pred_check_branch
        %241 = sbr.rel (%p239) target = $region16
      $region15: #{double_conv.2} parent=11 // pred_region
        _
      $region16: #{double_conv.2} parent=11 // pred_fallthru
        _
      // Predicated region
      $region17: #{double_conv.2} parent=11 // pred_check
        %p242 = pneg %p83
      $region18: #{double_conv.2} parent=11 // pred_check_branch
        %244 = sbr.rel (%p242) target = $region20
      $region19: #{double_conv.2} parent=11 // pred_region
        _
      $region20: #{double_conv.2} parent=11 // pred_fallthru
        _
      // Predicated region
      $region21: #{double_conv.2} parent=11 // pred_check
        %p245 = pneg %p104
      $region22: #{double_conv.2} parent=11 // pred_check_branch
        %247 = sbr.rel (%p245) target = $region24
      $region23: #{double_conv.2} parent=11 // pred_region
        _
      $region24: #{double_conv.2} parent=11 // pred_fallthru
        _
      // Predicated region
      $region25: #{double_conv.2} parent=11 // pred_check
        %p248 = pneg %p125
      $region26: #{double_conv.2} parent=11 // pred_check_branch
        %250 = sbr.rel (%p248) target = $region28
      $region27: #{double_conv.2} parent=11 // pred_region
        _
      $region28: #{double_conv.2} parent=11 // pred_fallthru
        _
      // Predicated region
      $region29: #{double_conv.2} parent=11 // pred_check
        %p251 = pneg %p146
      $region30: #{double_conv.2} parent=11 // pred_check_branch
        %253 = sbr.rel (%p251) target = $region32
      $region31: #{double_conv.2} parent=11 // pred_region
        _
      $region32: #{double_conv.2} parent=11 // pred_fallthru
        _
    $region12: #{double_conv.2} parent=5 // pred_fallthru
      _
    %p254 = scmp.lt.s32.totalorder %s15, 2
    // Predicated region
    $region33: #{double_conv.2} parent=5 // pred_check
      %p255 = pneg %p254
    $region34: #{double_conv.2} parent=5 // pred_check_branch
      %257 = sbr.rel (%p255) target = $region36
    $region35: #{double_conv.2} parent=5 // pred_region
      // Predicated region
      $region37: #{double_conv.2} parent=35 // pred_check
        %p258 = pneg %p35
      $region38: #{double_conv.2} parent=35 // pred_check_branch
        %260 = sbr.rel (%p258) target = $region40
      $region39: #{double_conv.2} parent=35 // pred_region
        %p261 = scmp.lt.s32.totalorder %s15, 1
        %s262 = scalar_select %p261, %s15, 1
        %s263 = smul.addr %s262, 3
        %s264 = smul.addr %s263, 8
        %s265 = scalar_lea.vmem %s0, %s264
      $region40: #{double_conv.2} parent=35 // pred_fallthru
        _
    $region36: #{double_conv.2} parent=5 // pred_fallthru
      _
    %p266 = scmp.le.s32.totalorder 1, %s15
    %p267 = scmp.lt.s32.totalorder %s15, 3
    %p268 = pnand %p266, %p267
    %p269 = pneg %p268
    // Predicated region
    $region41: #{double_conv.2} parent=5 // pred_check
      _
    $region42: #{double_conv.2} parent=5 // pred_check_branch
      %271 = sbr.rel (%p268) target = $region44
    $region43: #{double_conv.2} parent=5 // pred_region
      %s272 = ssub.s32 %s15, 1
      %p273 = scmp.lt.s32.totalorder %s20, 1
      %s274 = scalar_select %p273, %s20, 1
      %s275 = smul.addr %s274, 3
      %s276 = smul.addr %s275, 8
      %s277 = scalar_lea.vmem %s0, %s276
      %p278 = pneg %p41
      %p279 = pneg %p38
      %p280 = pneg %p62
      %p281 = pneg %p59
      %p282 = pneg %p83
      %p283 = pneg %p80
      %p284 = pneg %p104
      %p285 = pneg %p101
      %p286 = pneg %p125
      %p287 = pneg %p122
      %p288 = pneg %p146
      %p289 = pneg %p143
      %p290 = pneg %p172
      %p291 = pneg %p169
      %p292 = scmp.lt.s32.totalorder %s20, 1
      %s293 = scalar_select %p292, %s20, 1
      %s294 = smul.addr %s293, 12
      %s295 = smul.addr %s294, 8
      %s296 = scalar_lea.vmem %s6, %s295
      %p297 = pneg %p198
      %p298 = pneg %p195
      %p299 = scmp.lt.s32.totalorder %s20, 1
      %s300 = scalar_select %p299, %s20, 1
      %s301 = smul.addr %s300, 4
      %s302 = smul.addr %s301, 8
      %s303 = scalar_lea.vmem %s7, %s302
      %p304 = pneg %p224
      %p305 = pneg %p221
      %p306 = scmp.lt.s32.totalorder %s20, 1
      %s307 = scalar_select %p306, %s20, 1
      %s308 = smul.addr %s307, 4
      %s309 = smul.addr %s308, 8
      %s310 = scalar_lea.vmem %s8, %s309
      %p311 = scmp.lt.s32.totalorder %s20, 1
      %s312 = scalar_select %p311, %s20, 1
      %s313 = smul.addr %s312, 3
      %s314 = smul.addr %s313, 8
      %s315 = scalar_lea.vmem %s0, %s314
      %p316 = scmp.lt.s32.totalorder %s20, 1
      %s317 = scalar_select %p316, %s20, 1
      %s318 = smul.addr %s317, 12
      %s319 = smul.addr %s318, 8
      %s320 = scalar_lea.vmem %s6, %s319
      %p321 = scmp.lt.s32.totalorder %s20, 1
      %s322 = scalar_select %p321, %s20, 1
      %s323 = smul.addr %s322, 4
      %s324 = smul.addr %s323, 8
      %s325 = scalar_lea.vmem %s7, %s324
      %p326 = scmp.lt.s32.totalorder %s20, 1
      %s327 = scalar_select %p326, %s20, 1
      %s328 = smul.addr %s327, 4
      %s329 = smul.addr %s328, 8
      %s330 = scalar_lea.vmem %s8, %s329
      %v331 = vld [vmem:[%s315] sm:$0xff]
      %v332 = vld [vmem:[%s315 + $0x8] sm:$0xff]
      %v333 = vld [vmem:[%s315 + $0x10] sm:$0xff]
      %334 = vrot.lane.b32.xlu0 %v331, 19
      %v335 = vpop.permute.xlu0 %334
      %336 = vrot.lane.b32.xlu0 %v332, 19
      %v337 = vpop.permute.xlu0 %336
      %338 = vrot.lane.b32.xlu0 %v333, 19
      %v339 = vpop.permute.xlu0 %338
      %v340 = vlaneseq
      %v341 = vand.u32 %v340, 127
      %vm342 = vcmp.lt.s32.totalorder %v341, 19
      %v343 = vsel %vm342, %v337, %v339
      %v344 = vsel %vm342, %v335, %v337
      %v345 = vsel %vm342, %v339, %v335
      %346 = vrot.lane.b32.xlu0 %v331, 18
      %v347 = vpop.permute.xlu0 %346
      %348 = vrot.lane.b32.xlu0 %v332, 18
      %v349 = vpop.permute.xlu0 %348
      %350 = vrot.lane.b32.xlu0 %v333, 18
      %v351 = vpop.permute.xlu0 %350
      %vm352 = vcmp.lt.s32.totalorder %v341, 18
      %v353 = vsel %vm352, %v349, %v351
      %v354 = vsel %vm352, %v347, %v349
      %v355 = vsel %vm352, %v351, %v347
      %356 = vrot.lane.b32.xlu0 %v331, 17
      %v357 = vpop.permute.xlu0 %356
      %358 = vrot.lane.b32.xlu0 %v332, 17
      %v359 = vpop.permute.xlu0 %358
      %360 = vrot.lane.b32.xlu0 %v333, 17
      %v361 = vpop.permute.xlu0 %360
      %vm362 = vcmp.lt.s32.totalorder %v341, 17
      %v363 = vsel %vm362, %v359, %v361
      %v364 = vsel %vm362, %v357, %v359
      %v365 = vsel %vm362, %v361, %v357
      %366 = vrot.lane.b32.xlu0 %v331, 1
      %v367 = vpop.permute.xlu0 %366
      %368 = vrot.lane.b32.xlu0 %v332, 1
      %v369 = vpop.permute.xlu0 %368
      %370 = vrot.lane.b32.xlu0 %v333, 1
      %v371 = vpop.permute.xlu0 %370
      %vm372 = vcmp.lt.s32.totalorder %v341, 1
      %v373 = vsel %vm372, %v369, %v371
      %v374 = vsel %vm372, %v367, %v369
      %v375 = vsel %vm372, %v371, %v367
      %376 = vrot.lane.b32.xlu0 %v331, 127
      %v377 = vpop.permute.xlu0 %376
      %378 = vrot.lane.b32.xlu0 %v332, 127
      %v379 = vpop.permute.xlu0 %378
      %380 = vrot.lane.b32.xlu0 %v333, 127
      %v381 = vpop.permute.xlu0 %380
      %vm382 = vcmp.lt.s32.totalorder %v341, 127
      %v383 = vsel %vm382, %v379, %v381
      %v384 = vsel %vm382, %v377, %v379
      %v385 = vsel %vm382, %v381, %v377
      %386 = vrot.lane.b32.xlu0 %v331, 111
      %v387 = vpop.permute.xlu0 %386
      %388 = vrot.lane.b32.xlu0 %v332, 111
      %v389 = vpop.permute.xlu0 %388
      %390 = vrot.lane.b32.xlu0 %v333, 111
      %v391 = vpop.permute.xlu0 %390
      %vm392 = vcmp.lt.s32.totalorder %v341, 111
      %v393 = vsel %vm392, %v389, %v391
      %v394 = vsel %vm392, %v387, %v389
      %v395 = vsel %vm392, %v391, %v387
      %396 = vrot.lane.b32.xlu0 %v331, 110
      %v397 = vpop.permute.xlu0 %396
      %398 = vrot.lane.b32.xlu0 %v332, 110
      %v399 = vpop.permute.xlu0 %398
      %400 = vrot.lane.b32.xlu0 %v333, 110
      %v401 = vpop.permute.xlu0 %400
      %vm402 = vcmp.lt.s32.totalorder %v341, 110
      %v403 = vsel %vm402, %v399, %v401
      %v404 = vsel %vm402, %v397, %v399
      %v405 = vsel %vm402, %v401, %v397
      %406 = vrot.lane.b32.xlu0 %v331, 109
      %v407 = vpop.permute.xlu0 %406
      %408 = vrot.lane.b32.xlu0 %v332, 109
      %v409 = vpop.permute.xlu0 %408
      %410 = vrot.lane.b32.xlu0 %v333, 109
      %v411 = vpop.permute.xlu0 %410
      %vm412 = vcmp.lt.s32.totalorder %v341, 109
      %v413 = vsel %vm412, %v409, %v411
      %v414 = vsel %vm412, %v407, %v409
      %v415 = vsel %vm412, %v411, %v407
      %v416 = vld [vmem:[%s1] sm:$0xff]
      %v417 = vld [vmem:[%s1 + $0x8] sm:$0xff]
      %v418 = vld [vmem:[%s1 + $0x10] sm:$0xff]
      %v419 = vld [vmem:[%s1 + $0x18] sm:$0xff]
      %v420 = vld [vmem:[%s2] sm:$0xff]
      %v421 = vld [vmem:[%s2 + $0x8] sm:$0xff]
      %v422 = vld [vmem:[%s2 + $0x10] sm:$0xff]
      %v423 = vld [vmem:[%s2 + $0x18] sm:$0xff]
      %425 = vset.pattern.permute.xlu0 0
      %426 = vperm.xlu0 %425, %v420
      %v427 = vpop.permute.xlu0 %426
      %430 = vset.pattern.permute.xlu0 0
      %431 = vperm.xlu0 %430, %v421
      %v432 = vpop.permute.xlu0 %431
      %435 = vset.pattern.permute.xlu0 0
      %436 = vperm.xlu0 %435, %v422
      %v437 = vpop.permute.xlu0 %436
      %440 = vset.pattern.permute.xlu0 0
      %441 = vperm.xlu0 %440, %v423
      %v442 = vpop.permute.xlu0 %441
      %vm444 = vcmask 588800
      %v446 = vsel %vm444, %v416, 0
      %v449 = vsel %vm444, %v417, 0
      %v452 = vsel %vm444, %v418, 0
      %v455 = vsel %vm444, %v419, 0
      %457 = vmatprep.subr.mxu0 0.0
      %458 = vmatpush1.msra.mxu0 0.0
      %459 = vmatprep.subr.mxu0 0.0
      %460 = vmatpush1.msra.mxu0 0.0
      %461 = vmatprep.subr.mxu0 0.0
      %462 = vmatpush1.msra.mxu0 0.0
      %463 = vmatprep.subr.mxu0 0.0
      %464 = vmatpush1.msra.mxu0 0.0
      %465 = vmatprep.subr.mxu0 0.0
      %466 = vmatpush1.msra.mxu0 0.0
      %467 = vmatprep.subr.mxu0 0.0
      %468 = vmatpush1.msra.mxu0 0.0
      %469 = vmatprep.subr.mxu0 0.0
      %470 = vmatpush1.msra.mxu0 0.0
      %471 = vmatprep.subr.mxu0 %v413
      %472 = vmatpush1.msra.mxu0 %v414
      %473 = vmatprep.subr.mxu0 %v403
      %474 = vmatpush1.msra.mxu0 %v404
      %475 = vmatprep.subr.mxu0 %v393
      %476 = vmatpush1.msra.mxu0 %v394
      %477 = vmatprep.subr.mxu0 %v383
      %478 = vmatpush1.msra.mxu0 %v384
      %479 = vmatprep.subr.mxu0 %v332
      %480 = vmatpush1.msra.mxu0 %v331
      %481 = vmatprep.subr.mxu0 %v374
      %482 = vmatpush1.msra.mxu0 %v375
      %483 = vmatprep.subr.mxu0 %v364
      %484 = vmatpush1.msra.mxu0 %v365
      %485 = vmatprep.subr.mxu0 %v354
      %486 = vmatpush1.msra.mxu0 %v355
      %487 = vmatprep.subr.mxu0 %v344
      %488 = vmatpush1.msra.mxu0 %v345
      %489 = vmatprep.subr.mxu0 0.0
      %490 = vmatpush2.msra.mxu0 0.0
      %491 = vmatprep.subr.mxu0 0.0
      %492 = vmatpush2.msra.mxu0 0.0
      %493 = vmatprep.subr.mxu0 0.0
      %494 = vmatpush2.msra.mxu0 0.0
      %495 = vmatprep.subr.mxu0 0.0
      %496 = vmatpush2.msra.mxu0 0.0
      %497 = vmatprep.subr.mxu0 0.0
      %498 = vmatpush2.msra.mxu0 0.0
      %499 = vmatprep.subr.mxu0 0.0
      %500 = vmatpush2.msra.mxu0 0.0
      %501 = vmatprep.subr.mxu0 0.0
      %502 = vmatpush2.msra.mxu0 0.0
      %503 = vmatprep.subr.mxu0 0.0
      %504 = vmatpush2.msra.mxu0 0.0
      %505 = vmatprep.subr.mxu0 0.0
      %506 = vmatpush2.msra.mxu0 0.0
      %507 = vmatprep.subr.mxu0 0.0
      %508 = vmatpush2.msra.mxu0 0.0
      %509 = vmatprep.subr.mxu0 0.0
      %510 = vmatpush2.msra.mxu0 0.0
      %511 = vmatprep.subr.mxu0 0.0
      %512 = vmatpush2.msra.mxu0 0.0
      %513 = vmatprep.subr.mxu0 0.0
      %514 = vmatpush2.msra.mxu0 0.0
      %515 = vmatprep.subr.mxu0 0.0
      %516 = vmatpush2.msra.mxu0 0.0
      %517 = vmatprep.subr.mxu0 0.0
      %518 = vmatpush2.msra.mxu0 0.0
      %519 = vmatprep.subr.mxu0 0.0
      %520 = vmatpush2.msra.mxu0 0.0
      %521 = vmatprep.mubr.f32.mxu0 0.0
      %522 = vmatmul.mubr.f32.gmra.mxu0 %v446
      %v523 = vpop.f32.mrf.mxu0
      %v524 = vadd.f32 %v427, %v523
      %v525 = vpop.f32.mrf.mxu0
      %v526 = vadd.f32 %v427, %v525
      %527 = vmatprep.mubr.f32.mxu0 0.0
      %528 = vmatmul.mubr.f32.gmra.mxu0 %v449
      %v529 = vpop.f32.mrf.mxu0
      %v530 = vadd.f32 %v432, %v529
      %v531 = vpop.f32.mrf.mxu0
      %v532 = vadd.f32 %v432, %v531
      %533 = vmatprep.mubr.f32.mxu0 0.0
      %534 = vmatmul.mubr.f32.gmra.mxu0 %v452
      %v535 = vpop.f32.mrf.mxu0
      %v536 = vadd.f32 %v437, %v535
      %v537 = vpop.f32.mrf.mxu0
      %v538 = vadd.f32 %v437, %v537
      %539 = vmatprep.mubr.f32.mxu0 0.0
      %540 = vmatmul.mubr.f32.gmra.mxu0 %v455
      %v541 = vpop.f32.mrf.mxu0
      %v542 = vadd.f32 %v442, %v541
      %v543 = vpop.f32.mrf.mxu0
      %v544 = vadd.f32 %v442, %v543
      %545 = vdwg.mxu0
      %546 = vmatprep.subr.mxu0 0.0
      %547 = vmatpush1.msra.mxu0 0.0
      %548 = vmatprep.subr.mxu0 0.0
      %549 = vmatpush1.msra.mxu0 0.0
      %550 = vmatprep.subr.mxu0 0.0
      %551 = vmatpush1.msra.mxu0 0.0
      %552 = vmatprep.subr.mxu0 0.0
      %553 = vmatpush1.msra.mxu0 0.0
      %554 = vmatprep.subr.mxu0 0.0
      %555 = vmatpush1.msra.mxu0 0.0
      %556 = vmatprep.subr.mxu0 0.0
      %557 = vmatpush1.msra.mxu0 0.0
      %558 = vmatprep.subr.mxu0 0.0
      %559 = vmatpush1.msra.mxu0 0.0
      %560 = vmatprep.subr.mxu0 0.0
      %561 = vmatpush1.msra.mxu0 %v415
      %562 = vmatprep.subr.mxu0 0.0
      %563 = vmatpush1.msra.mxu0 %v405
      %564 = vmatprep.subr.mxu0 0.0
      %565 = vmatpush1.msra.mxu0 %v395
      %566 = vmatprep.subr.mxu0 0.0
      %567 = vmatpush1.msra.mxu0 %v385
      %568 = vmatprep.subr.mxu0 0.0
      %569 = vmatpush1.msra.mxu0 %v333
      %570 = vmatprep.subr.mxu0 0.0
      %571 = vmatpush1.msra.mxu0 %v373
      %572 = vmatprep.subr.mxu0 0.0
      %573 = vmatpush1.msra.mxu0 %v363
      %574 = vmatprep.subr.mxu0 0.0
      %575 = vmatpush1.msra.mxu0 %v353
      %576 = vmatprep.subr.mxu0 0.0
      %577 = vmatpush1.msra.mxu0 %v343
      %578 = vmatprep.subr.mxu0 0.0
      %579 = vmatpush2.msra.mxu0 0.0
      %580 = vmatprep.subr.mxu0 0.0
      %581 = vmatpush2.msra.mxu0 0.0
      %582 = vmatprep.subr.mxu0 0.0
      %583 = vmatpush2.msra.mxu0 0.0
      %584 = vmatprep.subr.mxu0 0.0
      %585 = vmatpush2.msra.mxu0 0.0
      %586 = vmatprep.subr.mxu0 0.0
      %587 = vmatpush2.msra.mxu0 0.0
      %588 = vmatprep.subr.mxu0 0.0
      %589 = vmatpush2.msra.mxu0 0.0
      %590 = vmatprep.subr.mxu0 0.0
      %591 = vmatpush2.msra.mxu0 0.0
      %592 = vmatprep.subr.mxu0 0.0
      %593 = vmatpush2.msra.mxu0 0.0
      %594 = vmatprep.subr.mxu0 0.0
      %595 = vmatpush2.msra.mxu0 0.0
      %596 = vmatprep.subr.mxu0 0.0
      %597 = vmatpush2.msra.mxu0 0.0
      %598 = vmatprep.subr.mxu0 0.0
      %599 = vmatpush2.msra.mxu0 0.0
      %600 = vmatprep.subr.mxu0 0.0
      %601 = vmatpush2.msra.mxu0 0.0
      %602 = vmatprep.subr.mxu0 0.0
      %603 = vmatpush2.msra.mxu0 0.0
      %604 = vmatprep.subr.mxu0 0.0
      %605 = vmatpush2.msra.mxu0 0.0
      %606 = vmatprep.subr.mxu0 0.0
      %607 = vmatpush2.msra.mxu0 0.0
      %608 = vmatprep.subr.mxu0 0.0
      %609 = vmatpush2.msra.mxu0 0.0
      %610 = vmatprep.mubr.f32.mxu0 0.0
      %611 = vmatmul.mubr.f32.gmra.mxu0 %v446
      %v612 = vpop.f32.mrf.mxu0
      %v613 = vadd.f32 %v427, %v612
      %v614 = vpop.f32.mrf.mxu0
      %615 = vmatprep.mubr.f32.mxu0 0.0
      %616 = vmatmul.mubr.f32.gmra.mxu0 %v449
      %v617 = vpop.f32.mrf.mxu0
      %v618 = vadd.f32 %v432, %v617
      %v619 = vpop.f32.mrf.mxu0
      %620 = vmatprep.mubr.f32.mxu0 0.0
      %621 = vmatmul.mubr.f32.gmra.mxu0 %v452
      %v622 = vpop.f32.mrf.mxu0
      %v623 = vadd.f32 %v437, %v622
      %v624 = vpop.f32.mrf.mxu0
      %625 = vmatprep.mubr.f32.mxu0 0.0
      %626 = vmatmul.mubr.f32.gmra.mxu0 %v455
      %v627 = vpop.f32.mrf.mxu0
      %v628 = vadd.f32 %v442, %v627
      %v629 = vpop.f32.mrf.mxu0
      %630 = vdwg.mxu0
      %631 = vst [vmem:[%s320] sm:$0xff] %v524
      %632 = vst [vmem:[%s320 + $0x8] sm:$0xff] %v526
      %633 = vst [vmem:[%s320 + $0x10] sm:$0xff] %v613
      %634 = vst [vmem:[%s320 + $0x18] sm:$0xff] %v530
      %635 = vst [vmem:[%s320 + $0x20] sm:$0xff] %v532
      %636 = vst [vmem:[%s320 + $0x28] sm:$0xff] %v618
      %637 = vst [vmem:[%s320 + $0x30] sm:$0xff] %v536
      %638 = vst [vmem:[%s320 + $0x38] sm:$0xff] %v538
      %639 = vst [vmem:[%s320 + $0x40] sm:$0xff] %v623
      %640 = vst [vmem:[%s320 + $0x48] sm:$0xff] %v542
      %641 = vst [vmem:[%s320 + $0x50] sm:$0xff] %v544
      %642 = vst [vmem:[%s320 + $0x58] sm:$0xff] %v628
      %v643 = vld [vmem:[%s5] sm:$0x7]
      %v645 = vlaneseq
      %v646 = vshrl.u32 %v645, 7
      %v647 = vsub.s32 0, %v646
      %v648 = vrot.slane %v643, %v647
      %v649 = vlaneseq
      %v650 = vshrl.u32 %v649, 7
      %v651 = vsub.s32 1, %v650
      %v652 = vrot.slane %v643, %v651
      %v653 = vlaneseq
      %v654 = vshrl.u32 %v653, 7
      %v655 = vsub.s32 2, %v654
      %v656 = vrot.slane %v643, %v655
      %v660 = vmul.f32 %v524, %v648
      %v661 = vmul.f32 %v526, %v652
      %v662 = vmul.f32 %v613, %v656
      %v663 = vmul.f32 %v530, %v648
      %v664 = vmul.f32 %v532, %v652
      %v665 = vmul.f32 %v618, %v656
      %v666 = vmul.f32 %v536, %v648
      %v667 = vmul.f32 %v538, %v652
      %v668 = vmul.f32 %v623, %v656
      %v669 = vmul.f32 %v542, %v648
      %v670 = vmul.f32 %v544, %v652
      %v671 = vmul.f32 %v628, %v656
      %v672 = vadd.f32 %v660, %v661
      %v673 = vadd.f32 %v672, %v662
      %674 = vadd.xlane.f32.xlu0 %v673
      %v675 = vpop.xlane.xlu0 %674
      %v676 = vadd.f32 %v663, %v664
      %v677 = vadd.f32 %v676, %v665
      %678 = vadd.xlane.f32.xlu0 %v677
      %v679 = vpop.xlane.xlu0 %678
      %v680 = vadd.f32 %v666, %v667
      %v681 = vadd.f32 %v680, %v668
      %682 = vadd.xlane.f32.xlu0 %v681
      %v683 = vpop.xlane.xlu0 %682
      %v684 = vadd.f32 %v669, %v670
      %v685 = vadd.f32 %v684, %v671
      %686 = vadd.xlane.f32.xlu0 %v685
      %v687 = vpop.xlane.xlu0 %686
      %vm688 = vcmask 7168
      %689 = vst.msk [vmem:[%s325] sm:$0xff] %vm688, %v675
      %690 = vst.msk [vmem:[%s325 + $0x8] sm:$0xff] %vm688, %v679
      %691 = vst.msk [vmem:[%s325 + $0x10] sm:$0xff] %vm688, %v683
      %692 = vst.msk [vmem:[%s325 + $0x18] sm:$0xff] %vm688, %v687
      %v693 = vmul.f32 %v660, %v660
      %v694 = vmul.f32 %v661, %v661
      %v695 = vmul.f32 %v662, %v662
      %v696 = vmul.f32 %v663, %v663
      %v697 = vmul.f32 %v664, %v664
      %v698 = vmul.f32 %v665, %v665
      %v699 = vmul.f32 %v666, %v666
      %v700 = vmul.f32 %v667, %v667
      %v701 = vmul.f32 %v668, %v668
      %v702 = vmul.f32 %v669, %v669
      %v703 = vmul.f32 %v670, %v670
      %v704 = vmul.f32 %v671, %v671
      %v705 = vadd.f32 %v693, %v694
      %v706 = vadd.f32 %v705, %v695
      %707 = vadd.xlane.f32.xlu0 %v706
      %v708 = vpop.xlane.xlu0 %707
      %v709 = vadd.f32 %v696, %v697
      %v710 = vadd.f32 %v709, %v698
      %711 = vadd.xlane.f32.xlu0 %v710
      %v712 = vpop.xlane.xlu0 %711
      %v713 = vadd.f32 %v699, %v700
      %v714 = vadd.f32 %v713, %v701
      %715 = vadd.xlane.f32.xlu0 %v714
      %v716 = vpop.xlane.xlu0 %715
      %v717 = vadd.f32 %v702, %v703
      %v718 = vadd.f32 %v717, %v704
      %719 = vadd.xlane.f32.xlu0 %v718
      %v720 = vpop.xlane.xlu0 %719
      %721 = vst.msk [vmem:[%s330] sm:$0xff] %vm688, %v708
      %722 = vst.msk [vmem:[%s330 + $0x8] sm:$0xff] %vm688, %v712
      %723 = vst.msk [vmem:[%s330 + $0x10] sm:$0xff] %vm688, %v716
      %724 = vst.msk [vmem:[%s330 + $0x18] sm:$0xff] %vm688, %v720
      %p725 = scmp.lt.s32.totalorder %s20, 1
      %s726 = scalar_select %p725, %s20, 1
      %s727 = smul.addr %s726, 12
      %s728 = smul.addr %s727, 8
      %s729 = scalar_lea.vmem %s6, %s728
      %p730 = scmp.lt.s32.totalorder %s20, 1
      %s731 = scalar_select %p730, %s20, 1
      %s732 = smul.addr %s731, 4
      %s733 = smul.addr %s732, 8
      %s734 = scalar_lea.vmem %s7, %s733
      %p735 = scmp.lt.s32.totalorder %s20, 1
      %s736 = scalar_select %p735, %s20, 1
      %s737 = smul.addr %s736, 4
      %s738 = smul.addr %s737, 8
      %s739 = scalar_lea.vmem %s8, %s738
      // Predicated region
      $region45: #{double_conv.2} parent=43 // pred_check
        %p740 = pneg %p169
      $region46: #{double_conv.2} parent=43 // pred_check_branch
        %742 = sbr.rel (%p740) target = $region48
      $region47: #{double_conv.2} parent=43 // pred_region
        _
      $region48: #{double_conv.2} parent=43 // pred_fallthru
        _
      // Predicated region
      $region49: #{double_conv.2} parent=43 // pred_check
        %p743 = pneg %p195
      $region50: #{double_conv.2} parent=43 // pred_check_branch
        %745 = sbr.rel (%p743) target = $region52
      $region51: #{double_conv.2} parent=43 // pred_region
        _
      $region52: #{double_conv.2} parent=43 // pred_fallthru
        _
      // Predicated region
      $region53: #{double_conv.2} parent=43 // pred_check
        %p746 = pneg %p221
      $region54: #{double_conv.2} parent=43 // pred_check_branch
        %748 = sbr.rel (%p746) target = $region56
      $region55: #{double_conv.2} parent=43 // pred_region
        _
      $region56: #{double_conv.2} parent=43 // pred_fallthru
        _
    $region44: #{double_conv.2} parent=5 // pred_fallthru
      _
    %p749 = scmp.le.s32.totalorder 2, %s15
    // Predicated region
    $region57: #{double_conv.2} parent=5 // pred_check
      %p750 = pneg %p749
    $region58: #{double_conv.2} parent=5 // pred_check_branch
      %752 = sbr.rel (%p750) target = $region60
    $region59: #{double_conv.2} parent=5 // pred_region
      %s753 = ssub.s32 %s15, 2
      // Predicated region
      $region61: #{double_conv.2} parent=59 // pred_check
        %p754 = pneg %p175
      $region62: #{double_conv.2} parent=59 // pred_check_branch
        %756 = sbr.rel (%p754) target = $region64
      $region63: #{double_conv.2} parent=59 // pred_region
        %p757 = scmp.lt.s32.totalorder %s21, 1
        %s758 = scalar_select %p757, %s21, 1
        %s759 = smul.addr %s758, 12
        %s760 = smul.addr %s759, 8
        %s761 = scalar_lea.vmem %s6, %s760
      $region64: #{double_conv.2} parent=59 // pred_fallthru
        _
      // Predicated region
      $region65: #{double_conv.2} parent=59 // pred_check
        %p762 = pneg %p201
      $region66: #{double_conv.2} parent=59 // pred_check_branch
        %764 = sbr.rel (%p762) target = $region68
      $region67: #{double_conv.2} parent=59 // pred_region
        %p765 = scmp.lt.s32.totalorder %s21, 1
        %s766 = scalar_select %p765, %s21, 1
        %s767 = smul.addr %s766, 4
        %s768 = smul.addr %s767, 8
        %s769 = scalar_lea.vmem %s7, %s768
      $region68: #{double_conv.2} parent=59 // pred_fallthru
        _
      // Predicated region
      $region69: #{double_conv.2} parent=59 // pred_check
        %p770 = pneg %p227
      $region70: #{double_conv.2} parent=59 // pred_check_branch
        %772 = sbr.rel (%p770) target = $region72
      $region71: #{double_conv.2} parent=59 // pred_region
        %p773 = scmp.lt.s32.totalorder %s21, 1
        %s774 = scalar_select %p773, %s21, 1
        %s775 = smul.addr %s774, 4
        %s776 = smul.addr %s775, 8
        %s777 = scalar_lea.vmem %s8, %s776
      $region72: #{double_conv.2} parent=59 // pred_fallthru
        _
    $region60: #{double_conv.2} parent=5 // pred_fallthru
      _
  $region6: #{double_conv.2} parent=0 // loop_footer
    %s19 = sadd.s32 1, %s15
  $region7: #{double_conv.2} parent=0 // loop_footer_branch
    %14 = sbr.rel target = $region3
  $region8: #{double_conv.2} parent=0 // loop_exit
    _

// kernel: double_conv.3
$region0: #{double_conv.3}
  #allocation0 [shape = 'u32[]', space=smem, size = 0x4, offset = 0x4, fixed_abs, tag = 'smem constant byte address 0x4 - core index']
  #allocation1 [shape = 'u32[144,128]{1,0:T(1,128)}', space=vmem, size = 0x12000, scoped, tag = 'internal scratch']
  %s0 = inlined_call_operand.vmem [shape: f32[2,32,384], index: 0, kind: input, shape index: {}]
  %s1 = inlined_call_operand.vmem [shape: f32[32,288], index: 1, kind: input, shape index: {}]
  %s2 = inlined_call_operand.vmem [shape: f32[32,1], index: 2, kind: input, shape index: {}]
  %s3 = inlined_call_operand.vmem [shape: f32[32,1], index: 3, kind: input, shape index: {}]
  %s4 = inlined_call_operand.vmem [shape: f32[32,1], index: 4, kind: input, shape index: {}]
  %s5 = inlined_call_operand.vmem [shape: f32[1,384], index: 5, kind: input, shape index: {}]
  %s6 = inlined_call_operand.vmem [shape: f32[2,32,384], index: 6, kind: output, shape index: {0}]
  %s7 = inlined_call_operand.vmem [shape: f32[2,32,1], index: 7, kind: output, shape index: {1}]
  %s8 = inlined_call_operand.vmem [shape: f32[2,32,1], index: 8, kind: output, shape index: {2}]
  %9 = xla_tuple %s6, %s7, %s8
  %s10 = sld [smem:[#allocation0]]
  $region73: #{double_conv.3} parent=0
    _
  %s12 = ssub.s32 1, %s10
  %s13 = scalar_select 0, %s12, %s10
  loop: start=0, step=1, limit=4
  $region2: #{double_conv.3} parent=0 // loop_pre_header
    _
  $region3: #{double_conv.3} parent=0 // loop_header
    %s15 = sphi 0, %s19
    %p16 = scmp.ge.s32.totalorder %s15, 4
    %s25 = sphi 0, %s27
    %s28 = sphi 0, %s25
    %s29 = sphi 0, %s28
    %s45 = sphi 0, %s29
    %s49 = sphi 0, %s49
    %s51 = sphi 0, %s49
    %s52 = sphi 0, %s51
    %s66 = sphi 0, %s52
    %s70 = sphi 0, %s70
    %s72 = sphi 0, %s70
    %s73 = sphi 0, %s72
    %s87 = sphi 0, %s73
    %s91 = sphi 0, %s91
    %s93 = sphi 0, %s91
    %s94 = sphi 0, %s93
    %s108 = sphi 0, %s94
    %s112 = sphi 0, %s112
    %s114 = sphi 0, %s112
    %s115 = sphi 0, %s114
    %s129 = sphi 0, %s115
    %s133 = sphi 0, %s133
    %s135 = sphi 0, %s133
    %s136 = sphi 0, %s135
    %s150 = sphi 0, %s136
    %s156 = sphi 0, %s158
    %s159 = sphi 0, %s156
    %s160 = sphi 0, %s159
    %s176 = sphi 0, %s160
    %s182 = sphi 0, %s184
    %s185 = sphi 0, %s182
    %s186 = sphi 0, %s185
    %s202 = sphi 0, %s186
    %s208 = sphi 0, %s210
    %s211 = sphi 0, %s208
    %s212 = sphi 0, %s211
    %s228 = sphi 0, %s212
  $region4: #{double_conv.3} parent=0 // loop_header_branch
    %18 = sbr.rel (%p16) target = $region8
  $region5: #{double_conv.3} parent=0 // loop_body
    %s20 = ssub.s32 %s15, 1
    %s21 = ssub.s32 %s15, 2
    %s22 = sadd.s32 %s15, 1
    %s23 = ssub.s32 %s15, %s22
    %p24 = scmp.eq.s32.totalorder %s23, 0
    %s26 = sadd.s32 %s25, 1
    %s27 = scalar_select %p24, %s25, %s26
    %p30 = pneg %p24
    %p31 = scmp.eq.s32.totalorder %s15, 1
    %p32 = por %p30, %p31
    %p33 = scmp.ne.s32.totalorder %s25, %s28
    %p34 = scmp.eq.s32.totalorder %s15, 0
    %p35 = por %p33, %p34
    %p36 = scmp.ne.s32.totalorder %s25, %s28
    %p37 = scmp.eq.s32.totalorder %s20, 1
    %p38 = por %p36, %p37
    %p39 = scmp.ne.s32.totalorder %s28, %s29
    %p40 = scmp.eq.s32.totalorder %s20, 0
    %p41 = por %p39, %p40
    %p42 = scmp.ne.s32.totalorder %s28, %s29
    %p43 = scmp.eq.s32.totalorder %s21, 1
    %p44 = por %p42, %p43
    %p46 = scmp.ne.s32.totalorder %s29, %s45
    %p47 = scmp.eq.s32.totalorder %s21, 0
    %p48 = por %p46, %p47
    %s50 = sadd.s32 %s49, 1
    %p53 = scmp.eq.s32.totalorder %s15, 1
    %p54 = scmp.ne.s32.totalorder %s49, %s51
    %p55 = scmp.eq.s32.totalorder %s15, 0
    %p56 = por %p54, %p55
    %p57 = scmp.ne.s32.totalorder %s49, %s51
    %p58 = scmp.eq.s32.totalorder %s20, 1
    %p59 = por %p57, %p58
    %p60 = scmp.ne.s32.totalorder %s51, %s52
    %p61 = scmp.eq.s32.totalorder %s20, 0
    %p62 = por %p60, %p61
    %p63 = scmp.ne.s32.totalorder %s51, %s52
    %p64 = scmp.eq.s32.totalorder %s21, 1
    %p65 = por %p63, %p64
    %p67 = scmp.ne.s32.totalorder %s52, %s66
    %p68 = scmp.eq.s32.totalorder %s21, 0
    %p69 = por %p67, %p68
    %s71 = sadd.s32 %s70, 1
    %p74 = scmp.eq.s32.totalorder %s15, 1
    %p75 = scmp.ne.s32.totalorder %s70, %s72
    %p76 = scmp.eq.s32.totalorder %s15, 0
    %p77 = por %p75, %p76
    %p78 = scmp.ne.s32.totalorder %s70, %s72
    %p79 = scmp.eq.s32.totalorder %s20, 1
    %p80 = por %p78, %p79
    %p81 = scmp.ne.s32.totalorder %s72, %s73
    %p82 = scmp.eq.s32.totalorder %s20, 0
    %p83 = por %p81, %p82
    %p84 = scmp.ne.s32.totalorder %s72, %s73
    %p85 = scmp.eq.s32.totalorder %s21, 1
    %p86 = por %p84, %p85
    %p88 = scmp.ne.s32.totalorder %s73, %s87
    %p89 = scmp.eq.s32.totalorder %s21, 0
    %p90 = por %p88, %p89
    %s92 = sadd.s32 %s91, 1
    %p95 = scmp.eq.s32.totalorder %s15, 1
    %p96 = scmp.ne.s32.totalorder %s91, %s93
    %p97 = scmp.eq.s32.totalorder %s15, 0
    %p98 = por %p96, %p97
    %p99 = scmp.ne.s32.totalorder %s91, %s93
    %p100 = scmp.eq.s32.totalorder %s20, 1
    %p101 = por %p99, %p100
    %p102 = scmp.ne.s32.totalorder %s93, %s94
    %p103 = scmp.eq.s32.totalorder %s20, 0
    %p104 = por %p102, %p103
    %p105 = scmp.ne.s32.totalorder %s93, %s94
    %p106 = scmp.eq.s32.totalorder %s21, 1
    %p107 = por %p105, %p106
    %p109 = scmp.ne.s32.totalorder %s94, %s108
    %p110 = scmp.eq.s32.totalorder %s21, 0
    %p111 = por %p109, %p110
    %s113 = sadd.s32 %s112, 1
    %p116 = scmp.eq.s32.totalorder %s15, 1
    %p117 = scmp.ne.s32.totalorder %s112, %s114
    %p118 = scmp.eq.s32.totalorder %s15, 0
    %p119 = por %p117, %p118
    %p120 = scmp.ne.s32.totalorder %s112, %s114
    %p121 = scmp.eq.s32.totalorder %s20, 1
    %p122 = por %p120, %p121
    %p123 = scmp.ne.s32.totalorder %s114, %s115
    %p124 = scmp.eq.s32.totalorder %s20, 0
    %p125 = por %p123, %p124
    %p126 = scmp.ne.s32.totalorder %s114, %s115
    %p127 = scmp.eq.s32.totalorder %s21, 1
    %p128 = por %p126, %p127
    %p130 = scmp.ne.s32.totalorder %s115, %s129
    %p131 = scmp.eq.s32.totalorder %s21, 0
    %p132 = por %p130, %p131
    %s134 = sadd.s32 %s133, 1
    %p137 = scmp.eq.s32.totalorder %s15, 1
    %p138 = scmp.ne.s32.totalorder %s133, %s135
    %p139 = scmp.eq.s32.totalorder %s15, 0
    %p140 = por %p138, %p139
    %p141 = scmp.ne.s32.totalorder %s133, %s135
    %p142 = scmp.eq.s32.totalorder %s20, 1
    %p143 = por %p141, %p142
    %p144 = scmp.ne.s32.totalorder %s135, %s136
    %p145 = scmp.eq.s32.totalorder %s20, 0
    %p146 = por %p144, %p145
    %p147 = scmp.ne.s32.totalorder %s135, %s136
    %p148 = scmp.eq.s32.totalorder %s21, 1
    %p149 = por %p147, %p148
    %p151 = scmp.ne.s32.totalorder %s136, %s150
    %p152 = scmp.eq.s32.totalorder %s21, 0
    %p153 = por %p151, %p152
    %s154 = ssub.s32 %s15, %s22
    %p155 = scmp.eq.s32.totalorder %s154, 0
    %s157 = sadd.s32 %s156, 1
    %s158 = scalar_select %p155, %s156, %s157
    %p161 = pneg %p155
    %p162 = scmp.eq.s32.totalorder %s15, 1
    %p163 = por %p161, %p162
    %p164 = scmp.ne.s32.totalorder %s156, %s159
    %p165 = scmp.eq.s32.totalorder %s15, 0
    %p166 = por %p164, %p165
    %p167 = scmp.ne.s32.totalorder %s156, %s159
    %p168 = scmp.eq.s32.totalorder %s20, 1
    %p169 = por %p167, %p168
    %p170 = scmp.ne.s32.totalorder %s159, %s160
    %p171 = scmp.eq.s32.totalorder %s20, 0
    %p172 = por %p170, %p171
    %p173 = scmp.ne.s32.totalorder %s159, %s160
    %p174 = scmp.eq.s32.totalorder %s21, 1
    %p175 = por %p173, %p174
    %p177 = scmp.ne.s32.totalorder %s160, %s176
    %p178 = scmp.eq.s32.totalorder %s21, 0
    %p179 = por %p177, %p178
    %s180 = ssub.s32 %s15, %s22
    %p181 = scmp.eq.s32.totalorder %s180, 0
    %s183 = sadd.s32 %s182, 1
    %s184 = scalar_select %p181, %s182, %s183
    %p187 = pneg %p181
    %p188 = scmp.eq.s32.totalorder %s15, 1
    %p189 = por %p187, %p188
    %p190 = scmp.ne.s32.totalorder %s182, %s185
    %p191 = scmp.eq.s32.totalorder %s15, 0
    %p192 = por %p190, %p191
    %p193 = scmp.ne.s32.totalorder %s182, %s185
    %p194 = scmp.eq.s32.totalorder %s20, 1
    %p195 = por %p193, %p194
    %p196 = scmp.ne.s32.totalorder %s185, %s186
    %p197 = scmp.eq.s32.totalorder %s20, 0
    %p198 = por %p196, %p197
    %p199 = scmp.ne.s32.totalorder %s185, %s186
    %p200 = scmp.eq.s32.totalorder %s21, 1
    %p201 = por %p199, %p200
    %p203 = scmp.ne.s32.totalorder %s186, %s202
    %p204 = scmp.eq.s32.totalorder %s21, 0
    %p205 = por %p203, %p204
    %s206 = ssub.s32 %s15, %s22
    %p207 = scmp.eq.s32.totalorder %s206, 0
    %s209 = sadd.s32 %s208, 1
    %s210 = scalar_select %p207, %s208, %s209
    %p213 = pneg %p207
    %p214 = scmp.eq.s32.totalorder %s15, 1
    %p215 = por %p213, %p214
    %p216 = scmp.ne.s32.totalorder %s208, %s211
    %p217 = scmp.eq.s32.totalorder %s15, 0
    %p218 = por %p216, %p217
    %p219 = scmp.ne.s32.totalorder %s208, %s211
    %p220 = scmp.eq.s32.totalorder %s20, 1
    %p221 = por %p219, %p220
    %p222 = scmp.ne.s32.totalorder %s211, %s212
    %p223 = scmp.eq.s32.totalorder %s20, 0
    %p224 = por %p222, %p223
    %p225 = scmp.ne.s32.totalorder %s211, %s212
    %p226 = scmp.eq.s32.totalorder %s21, 1
    %p227 = por %p225, %p226
    %p229 = scmp.ne.s32.totalorder %s212, %s228
    %p230 = scmp.eq.s32.totalorder %s21, 0
    %p231 = por %p229, %p230
    %p232 = scmp.le.s32.totalorder 1, %s15
    %p233 = scmp.lt.s32.totalorder %s15, 3
    %p234 = pnand %p232, %p233
    %p235 = pneg %p234
    // Predicated region
    $region9: #{double_conv.3} parent=5 // pred_check
      _
    $region10: #{double_conv.3} parent=5 // pred_check_branch
      %237 = sbr.rel (%p234) target = $region12
    $region11: #{double_conv.3} parent=5 // pred_region
      %s238 = ssub.s32 %s15, 1
      // Predicated region
      $region13: #{double_conv.3} parent=11 // pred_check
        %p239 = pneg %p62
      $region14: #{double_conv.3} parent=11 // pred_check_branch
        %241 = sbr.rel (%p239) target = $region16
      $region15: #{double_conv.3} parent=11 // pred_region
        _
      $region16: #{double_conv.3} parent=11 // pred_fallthru
        _
      // Predicated region
      $region17: #{double_conv.3} parent=11 // pred_check
        %p242 = pneg %p83
      $region18: #{double_conv.3} parent=11 // pred_check_branch
        %244 = sbr.rel (%p242) target = $region20
      $region19: #{double_conv.3} parent=11 // pred_region
        _
      $region20: #{double_conv.3} parent=11 // pred_fallthru
        _
      // Predicated region
      $region21: #{double_conv.3} parent=11 // pred_check
        %p245 = pneg %p104
      $region22: #{double_conv.3} parent=11 // pred_check_branch
        %247 = sbr.rel (%p245) target = $region24
      $region23: #{double_conv.3} parent=11 // pred_region
        _
      $region24: #{double_conv.3} parent=11 // pred_fallthru
        _
      // Predicated region
      $region25: #{double_conv.3} parent=11 // pred_check
        %p248 = pneg %p125
      $region26: #{double_conv.3} parent=11 // pred_check_branch
        %250 = sbr.rel (%p248) target = $region28
      $region27: #{double_conv.3} parent=11 // pred_region
        _
      $region28: #{double_conv.3} parent=11 // pred_fallthru
        _
      // Predicated region
      $region29: #{double_conv.3} parent=11 // pred_check
        %p251 = pneg %p146
      $region30: #{double_conv.3} parent=11 // pred_check_branch
        %253 = sbr.rel (%p251) target = $region32
      $region31: #{double_conv.3} parent=11 // pred_region
        _
      $region32: #{double_conv.3} parent=11 // pred_fallthru
        _
    $region12: #{double_conv.3} parent=5 // pred_fallthru
      _
    %p254 = scmp.lt.s32.totalorder %s15, 2
    // Predicated region
    $region33: #{double_conv.3} parent=5 // pred_check
      %p255 = pneg %p254
    $region34: #{double_conv.3} parent=5 // pred_check_branch
      %257 = sbr.rel (%p255) target = $region36
    $region35: #{double_conv.3} parent=5 // pred_region
      // Predicated region
      $region37: #{double_conv.3} parent=35 // pred_check
        %p258 = pneg %p35
      $region38: #{double_conv.3} parent=35 // pred_check_branch
        %260 = sbr.rel (%p258) target = $region40
      $region39: #{double_conv.3} parent=35 // pred_region
        %p261 = scmp.lt.s32.totalorder %s15, 1
        %s262 = scalar_select %p261, %s15, 1
        %s263 = smul.addr %s262, 12
        %s264 = smul.addr %s263, 8
        %s265 = scalar_lea.vmem %s0, %s264
      $region40: #{double_conv.3} parent=35 // pred_fallthru
        _
    $region36: #{double_conv.3} parent=5 // pred_fallthru
      _
    %p266 = scmp.le.s32.totalorder 1, %s15
    %p267 = scmp.lt.s32.totalorder %s15, 3
    %p268 = pnand %p266, %p267
    %p269 = pneg %p268
    // Predicated region
    $region41: #{double_conv.3} parent=5 // pred_check
      _
    $region42: #{double_conv.3} parent=5 // pred_check_branch
      %271 = sbr.rel (%p268) target = $region44
    $region43: #{double_conv.3} parent=5 // pred_region
      %s272 = ssub.s32 %s15, 1
      %p273 = scmp.lt.s32.totalorder %s20, 1
      %s274 = scalar_select %p273, %s20, 1
      %s275 = smul.addr %s274, 12
      %s276 = smul.addr %s275, 8
      %s277 = scalar_lea.vmem %s0, %s276
      %p278 = pneg %p41
      %p279 = pneg %p38
      %p280 = pneg %p62
      %p281 = pneg %p59
      %p282 = pneg %p83
      %p283 = pneg %p80
      %p284 = pneg %p104
      %p285 = pneg %p101
      %p286 = pneg %p125
      %p287 = pneg %p122
      %p288 = pneg %p146
      %p289 = pneg %p143
      %p290 = pneg %p172
      %p291 = pneg %p169
      %p292 = scmp.lt.s32.totalorder %s20, 1
      %s293 = scalar_select %p292, %s20, 1
      %s294 = smul.addr %s293, 12
      %s295 = smul.addr %s294, 8
      %s296 = scalar_lea.vmem %s6, %s295
      %p297 = pneg %p198
      %p298 = pneg %p195
      %p299 = scmp.lt.s32.totalorder %s20, 1
      %s300 = scalar_select %p299, %s20, 1
      %s301 = smul.addr %s300, 4
      %s302 = smul.addr %s301, 8
      %s303 = scalar_lea.vmem %s7, %s302
      %p304 = pneg %p224
      %p305 = pneg %p221
      %p306 = scmp.lt.s32.totalorder %s20, 1
      %s307 = scalar_select %p306, %s20, 1
      %s308 = smul.addr %s307, 4
      %s309 = smul.addr %s308, 8
      %s310 = scalar_lea.vmem %s8, %s309
      %p311 = scmp.lt.s32.totalorder %s20, 1
      %s312 = scalar_select %p311, %s20, 1
      %s313 = smul.addr %s312, 12
      %s314 = smul.addr %s313, 8
      %s315 = scalar_lea.vmem %s0, %s314
      %p316 = scmp.lt.s32.totalorder %s20, 1
      %s317 = scalar_select %p316, %s20, 1
      %s318 = smul.addr %s317, 12
      %s319 = smul.addr %s318, 8
      %s320 = scalar_lea.vmem %s6, %s319
      %p321 = scmp.lt.s32.totalorder %s20, 1
      %s322 = scalar_select %p321, %s20, 1
      %s323 = smul.addr %s322, 4
      %s324 = smul.addr %s323, 8
      %s325 = scalar_lea.vmem %s7, %s324
      %p326 = scmp.lt.s32.totalorder %s20, 1
      %s327 = scalar_select %p326, %s20, 1
      %s328 = smul.addr %s327, 4
      %s329 = smul.addr %s328, 8
      %s330 = scalar_lea.vmem %s8, %s329
      %v331 = vld [vmem:[%s315] sm:$0xff]
      %v332 = vld [vmem:[%s315 + $0x8] sm:$0xff]
      %v333 = vld [vmem:[%s315 + $0x10] sm:$0xff]
      %v334 = vld [vmem:[%s315 + $0x18] sm:$0xff]
      %v335 = vld [vmem:[%s315 + $0x20] sm:$0xff]
      %v336 = vld [vmem:[%s315 + $0x28] sm:$0xff]
      %v337 = vld [vmem:[%s315 + $0x30] sm:$0xff]
      %v338 = vld [vmem:[%s315 + $0x38] sm:$0xff]
      %v339 = vld [vmem:[%s315 + $0x40] sm:$0xff]
      %v340 = vld [vmem:[%s315 + $0x48] sm:$0xff]
      %v341 = vld [vmem:[%s315 + $0x50] sm:$0xff]
      %v342 = vld [vmem:[%s315 + $0x58] sm:$0xff]
      %v343 = vld [vmem:[%s3] sm:$0xff]
      %v344 = vld [vmem:[%s3 + $0x8] sm:$0xff]
      %v345 = vld [vmem:[%s3 + $0x10] sm:$0xff]
      %v346 = vld [vmem:[%s3 + $0x18] sm:$0xff]
      %348 = vset.pattern.permute.xlu0 0
      %349 = vperm.xlu0 %348, %v343
      %v350 = vpop.permute.xlu0 %349
      %353 = vset.pattern.permute.xlu0 0
      %354 = vperm.xlu0 %353, %v344
      %v355 = vpop.permute.xlu0 %354
      %358 = vset.pattern.permute.xlu0 0
      %359 = vperm.xlu0 %358, %v345
      %v360 = vpop.permute.xlu0 %359
      %363 = vset.pattern.permute.xlu0 0
      %364 = vperm.xlu0 %363, %v346
      %v365 = vpop.permute.xlu0 %364
      %v367 = vmul.f32 %v331, %v350
      %v368 = vmul.f32 %v332, %v350
      %v369 = vmul.f32 %v333, %v350
      %v370 = vmul.f32 %v334, %v355
      %v371 = vmul.f32 %v335, %v355
      %v372 = vmul.f32 %v336, %v355
      %v373 = vmul.f32 %v337, %v360
      %v374 = vmul.f32 %v338, %v360
      %v375 = vmul.f32 %v339, %v360
      %v376 = vmul.f32 %v340, %v365
      %v377 = vmul.f32 %v341, %v365
      %v378 = vmul.f32 %v342, %v365
      %v379 = vld [vmem:[%s4] sm:$0xff]
      %v380 = vld [vmem:[%s4 + $0x8] sm:$0xff]
      %v381 = vld [vmem:[%s4 + $0x10] sm:$0xff]
      %v382 = vld [vmem:[%s4 + $0x18] sm:$0xff]
      %384 = vset.pattern.permute.xlu0 0
      %385 = vperm.xlu0 %384, %v379
      %v386 = vpop.permute.xlu0 %385
      %389 = vset.pattern.permute.xlu0 0
      %390 = vperm.xlu0 %389, %v380
      %v391 = vpop.permute.xlu0 %390
      %394 = vset.pattern.permute.xlu0 0
      %395 = vperm.xlu0 %394, %v381
      %v396 = vpop.permute.xlu0 %395
      %399 = vset.pattern.permute.xlu0 0
      %400 = vperm.xlu0 %399, %v382
      %v401 = vpop.permute.xlu0 %400
      %v403 = vadd.f32 %v367, %v386
      %v404 = vadd.f32 %v368, %v386
      %v405 = vadd.f32 %v369, %v386
      %v406 = vadd.f32 %v370, %v391
      %v407 = vadd.f32 %v371, %v391
      %v408 = vadd.f32 %v372, %v391
      %v409 = vadd.f32 %v373, %v396
      %v410 = vadd.f32 %v374, %v396
      %v411 = vadd.f32 %v375, %v396
      %v412 = vadd.f32 %v376, %v401
      %v413 = vadd.f32 %v377, %v401
      %v414 = vadd.f32 %v378, %v401
      %vm415 = vcmp.ge.f32.partialorder %v403, 0.0
      %vm416 = vcmp.ge.f32.partialorder %v404, 0.0
      %vm417 = vcmp.ge.f32.partialorder %v405, 0.0
      %vm418 = vcmp.ge.f32.partialorder %v406, 0.0
      %vm419 = vcmp.ge.f32.partialorder %v407, 0.0
      %vm420 = vcmp.ge.f32.partialorder %v408, 0.0
      %vm421 = vcmp.ge.f32.partialorder %v409, 0.0
      %vm422 = vcmp.ge.f32.partialorder %v410, 0.0
      %vm423 = vcmp.ge.f32.partialorder %v411, 0.0
      %vm424 = vcmp.ge.f32.partialorder %v412, 0.0
      %vm425 = vcmp.ge.f32.partialorder %v413, 0.0
      %vm426 = vcmp.ge.f32.partialorder %v414, 0.0
      %v427 = vmul.f32 %v403, 0.01
      %v428 = vmul.f32 %v404, 0.01
      %v429 = vmul.f32 %v405, 0.01
      %v430 = vmul.f32 %v406, 0.01
      %v431 = vmul.f32 %v407, 0.01
      %v432 = vmul.f32 %v408, 0.01
      %v433 = vmul.f32 %v409, 0.01
      %v434 = vmul.f32 %v410, 0.01
      %v435 = vmul.f32 %v411, 0.01
      %v436 = vmul.f32 %v412, 0.01
      %v437 = vmul.f32 %v413, 0.01
      %v438 = vmul.f32 %v414, 0.01
      %v439 = vsel %vm415, %v403, %v427
      %v440 = vsel %vm416, %v404, %v428
      %v441 = vsel %vm417, %v405, %v429
      %v442 = vsel %vm418, %v406, %v430
      %v443 = vsel %vm419, %v407, %v431
      %v444 = vsel %vm420, %v408, %v432
      %v445 = vsel %vm421, %v409, %v433
      %v446 = vsel %vm422, %v410, %v434
      %v447 = vsel %vm423, %v411, %v435
      %v448 = vsel %vm424, %v412, %v436
      %v449 = vsel %vm425, %v413, %v437
      %v450 = vsel %vm426, %v414, %v438
      %v451 = vld [vmem:[%s5] sm:$0x7]
      %v453 = vlaneseq
      %v454 = vshrl.u32 %v453, 7
      %v455 = vsub.s32 0, %v454
      %v456 = vrot.slane %v451, %v455
      %v457 = vlaneseq
      %v458 = vshrl.u32 %v457, 7
      %v459 = vsub.s32 1, %v458
      %v460 = vrot.slane %v451, %v459
      %v461 = vlaneseq
      %v462 = vshrl.u32 %v461, 7
      %v463 = vsub.s32 2, %v462
      %v464 = vrot.slane %v451, %v463
      %v468 = vmul.f32 %v439, %v456
      %v469 = vmul.f32 %v440, %v460
      %v470 = vmul.f32 %v441, %v464
      %v471 = vmul.f32 %v442, %v456
      %v472 = vmul.f32 %v443, %v460
      %v473 = vmul.f32 %v444, %v464
      %v474 = vmul.f32 %v445, %v456
      %v475 = vmul.f32 %v446, %v460
      %v476 = vmul.f32 %v447, %v464
      %v477 = vmul.f32 %v448, %v456
      %v478 = vmul.f32 %v449, %v460
      %v479 = vmul.f32 %v450, %v464
      %480 = vrot.lane.b32.xlu0 %v468, 19
      %v481 = vpop.permute.xlu0 %480
      %482 = vrot.lane.b32.xlu0 %v471, 19
      %v483 = vpop.permute.xlu0 %482
      %484 = vrot.lane.b32.xlu0 %v474, 19
      %v485 = vpop.permute.xlu0 %484
      %486 = vrot.lane.b32.xlu0 %v477, 19
      %v487 = vpop.permute.xlu0 %486
      %488 = vrot.lane.b32.xlu0 %v469, 19
      %v489 = vpop.permute.xlu0 %488
      %490 = vrot.lane.b32.xlu0 %v472, 19
      %v491 = vpop.permute.xlu0 %490
      %492 = vrot.lane.b32.xlu0 %v475, 19
      %v493 = vpop.permute.xlu0 %492
      %494 = vrot.lane.b32.xlu0 %v478, 19
      %v495 = vpop.permute.xlu0 %494
      %496 = vrot.lane.b32.xlu0 %v470, 19
      %v497 = vpop.permute.xlu0 %496
      %498 = vrot.lane.b32.xlu0 %v473, 19
      %v499 = vpop.permute.xlu0 %498
      %500 = vrot.lane.b32.xlu0 %v476, 19
      %v501 = vpop.permute.xlu0 %500
      %502 = vrot.lane.b32.xlu0 %v479, 19
      %v503 = vpop.permute.xlu0 %502
      %v504 = vlaneseq
      %v505 = vand.u32 %v504, 127
      %vm506 = vcmp.lt.s32.totalorder %v505, 19
      %v507 = vsel %vm506, %v489, %v497
      %v508 = vsel %vm506, %v491, %v499
      %v509 = vsel %vm506, %v493, %v501
      %v510 = vsel %vm506, %v495, %v503
      %v511 = vsel %vm506, %v481, %v489
      %v512 = vsel %vm506, %v483, %v491
      %v513 = vsel %vm506, %v485, %v493
      %v514 = vsel %vm506, %v487, %v495
      %v515 = vsel %vm506, %v497, %v481
      %v516 = vsel %vm506, %v499, %v483
      %v517 = vsel %vm506, %v501, %v485
      %v518 = vsel %vm506, %v503, %v487
      %519 = vrot.lane.b32.xlu0 %v468, 18
      %v520 = vpop.permute.xlu0 %519
      %521 = vrot.lane.b32.xlu0 %v471, 18
      %v522 = vpop.permute.xlu0 %521
      %523 = vrot.lane.b32.xlu0 %v474, 18
      %v524 = vpop.permute.xlu0 %523
      %525 = vrot.lane.b32.xlu0 %v477, 18
      %v526 = vpop.permute.xlu0 %525
      %527 = vrot.lane.b32.xlu0 %v469, 18
      %v528 = vpop.permute.xlu0 %527
      %529 = vrot.lane.b32.xlu0 %v472, 18
      %v530 = vpop.permute.xlu0 %529
      %531 = vrot.lane.b32.xlu0 %v475, 18
      %v532 = vpop.permute.xlu0 %531
      %533 = vrot.lane.b32.xlu0 %v478, 18
      %v534 = vpop.permute.xlu0 %533
      %535 = vrot.lane.b32.xlu0 %v470, 18
      %v536 = vpop.permute.xlu0 %535
      %537 = vrot.lane.b32.xlu0 %v473, 18
      %v538 = vpop.permute.xlu0 %537
      %539 = vrot.lane.b32.xlu0 %v476, 18
      %v540 = vpop.permute.xlu0 %539
      %541 = vrot.lane.b32.xlu0 %v479, 18
      %v542 = vpop.permute.xlu0 %541
      %vm543 = vcmp.lt.s32.totalorder %v505, 18
      %v544 = vsel %vm543, %v528, %v536
      %v545 = vsel %vm543, %v530, %v538
      %v546 = vsel %vm543, %v532, %v540
      %v547 = vsel %vm543, %v534, %v542
      %v548 = vsel %vm543, %v520, %v528
      %v549 = vsel %vm543, %v522, %v530
      %v550 = vsel %vm543, %v524, %v532
      %v551 = vsel %vm543, %v526, %v534
      %v552 = vsel %vm543, %v536, %v520
      %v553 = vsel %vm543, %v538, %v522
      %v554 = vsel %vm543, %v540, %v524
      %v555 = vsel %vm543, %v542, %v526
      %556 = vrot.lane.b32.xlu0 %v468, 17
      %v557 = vpop.permute.xlu0 %556
      %558 = vrot.lane.b32.xlu0 %v471, 17
      %v559 = vpop.permute.xlu0 %558
      %560 = vrot.lane.b32.xlu0 %v474, 17
      %v561 = vpop.permute.xlu0 %560
      %562 = vrot.lane.b32.xlu0 %v477, 17
      %v563 = vpop.permute.xlu0 %562
      %564 = vrot.lane.b32.xlu0 %v469, 17
      %v565 = vpop.permute.xlu0 %564
      %566 = vrot.lane.b32.xlu0 %v472, 17
      %v567 = vpop.permute.xlu0 %566
      %568 = vrot.lane.b32.xlu0 %v475, 17
      %v569 = vpop.permute.xlu0 %568
      %570 = vrot.lane.b32.xlu0 %v478, 17
      %v571 = vpop.permute.xlu0 %570
      %572 = vrot.lane.b32.xlu0 %v470, 17
      %v573 = vpop.permute.xlu0 %572
      %574 = vrot.lane.b32.xlu0 %v473, 17
      %v575 = vpop.permute.xlu0 %574
      %576 = vrot.lane.b32.xlu0 %v476, 17
      %v577 = vpop.permute.xlu0 %576
      %578 = vrot.lane.b32.xlu0 %v479, 17
      %v579 = vpop.permute.xlu0 %578
      %vm580 = vcmp.lt.s32.totalorder %v505, 17
      %v581 = vsel %vm580, %v565, %v573
      %v582 = vsel %vm580, %v567, %v575
      %v583 = vsel %vm580, %v569, %v577
      %v584 = vsel %vm580, %v571, %v579
      %v585 = vsel %vm580, %v557, %v565
      %v586 = vsel %vm580, %v559, %v567
      %v587 = vsel %vm580, %v561, %v569
      %v588 = vsel %vm580, %v563, %v571
      %v589 = vsel %vm580, %v573, %v557
      %v590 = vsel %vm580, %v575, %v559
      %v591 = vsel %vm580, %v577, %v561
      %v592 = vsel %vm580, %v579, %v563
      %593 = vrot.lane.b32.xlu0 %v468, 1
      %v594 = vpop.permute.xlu0 %593
      %595 = vrot.lane.b32.xlu0 %v471, 1
      %v596 = vpop.permute.xlu0 %595
      %597 = vrot.lane.b32.xlu0 %v474, 1
      %v598 = vpop.permute.xlu0 %597
      %599 = vrot.lane.b32.xlu0 %v477, 1
      %v600 = vpop.permute.xlu0 %599
      %601 = vrot.lane.b32.xlu0 %v469, 1
      %v602 = vpop.permute.xlu0 %601
      %603 = vrot.lane.b32.xlu0 %v472, 1
      %v604 = vpop.permute.xlu0 %603
      %605 = vrot.lane.b32.xlu0 %v475, 1
      %v606 = vpop.permute.xlu0 %605
      %607 = vrot.lane.b32.xlu0 %v478, 1
      %v608 = vpop.permute.xlu0 %607
      %609 = vrot.lane.b32.xlu0 %v470, 1
      %v610 = vpop.permute.xlu0 %609
      %611 = vrot.lane.b32.xlu0 %v473, 1
      %v612 = vpop.permute.xlu0 %611
      %613 = vrot.lane.b32.xlu0 %v476, 1
      %v614 = vpop.permute.xlu0 %613
      %615 = vrot.lane.b32.xlu0 %v479, 1
      %v616 = vpop.permute.xlu0 %615
      %vm617 = vcmp.lt.s32.totalorder %v505, 1
      %v618 = vsel %vm617, %v602, %v610
      %v619 = vsel %vm617, %v604, %v612
      %v620 = vsel %vm617, %v606, %v614
      %v621 = vsel %vm617, %v608, %v616
      %v622 = vsel %vm617, %v594, %v602
      %v623 = vsel %vm617, %v596, %v604
      %v624 = vsel %vm617, %v598, %v606
      %v625 = vsel %vm617, %v600, %v608
      %v626 = vsel %vm617, %v610, %v594
      %v627 = vsel %vm617, %v612, %v596
      %v628 = vsel %vm617, %v614, %v598
      %v629 = vsel %vm617, %v616, %v600
      %630 = vrot.lane.b32.xlu0 %v468, 127
      %v631 = vpop.permute.xlu0 %630
      %632 = vrot.lane.b32.xlu0 %v471, 127
      %v633 = vpop.permute.xlu0 %632
      %634 = vrot.lane.b32.xlu0 %v474, 127
      %v635 = vpop.permute.xlu0 %634
      %636 = vrot.lane.b32.xlu0 %v477, 127
      %v637 = vpop.permute.xlu0 %636
      %638 = vrot.lane.b32.xlu0 %v469, 127
      %v639 = vpop.permute.xlu0 %638
      %640 = vrot.lane.b32.xlu0 %v472, 127
      %v641 = vpop.permute.xlu0 %640
      %642 = vrot.lane.b32.xlu0 %v475, 127
      %v643 = vpop.permute.xlu0 %642
      %644 = vrot.lane.b32.xlu0 %v478, 127
      %v645 = vpop.permute.xlu0 %644
      %646 = vrot.lane.b32.xlu0 %v470, 127
      %v647 = vpop.permute.xlu0 %646
      %648 = vrot.lane.b32.xlu0 %v473, 127
      %v649 = vpop.permute.xlu0 %648
      %650 = vrot.lane.b32.xlu0 %v476, 127
      %v651 = vpop.permute.xlu0 %650
      %652 = vrot.lane.b32.xlu0 %v479, 127
      %v653 = vpop.permute.xlu0 %652
      %vm654 = vcmp.lt.s32.totalorder %v505, 127
      %v655 = vsel %vm654, %v639, %v647
      %v656 = vsel %vm654, %v641, %v649
      %v657 = vsel %vm654, %v643, %v651
      %v658 = vsel %vm654, %v645, %v653
      %v659 = vsel %vm654, %v631, %v639
      %v660 = vsel %vm654, %v633, %v641
      %v661 = vsel %vm654, %v635, %v643
      %v662 = vsel %vm654, %v637, %v645
      %v663 = vsel %vm654, %v647, %v631
      %v664 = vsel %vm654, %v649, %v633
      %v665 = vsel %vm654, %v651, %v635
      %v666 = vsel %vm654, %v653, %v637
      %667 = vrot.lane.b32.xlu0 %v468, 111
      %v668 = vpop.permute.xlu0 %667
      %669 = vrot.lane.b32.xlu0 %v471, 111
      %v670 = vpop.permute.xlu0 %669
      %671 = vrot.lane.b32.xlu0 %v474, 111
      %v672 = vpop.permute.xlu0 %671
      %673 = vrot.lane.b32.xlu0 %v477, 111
      %v674 = vpop.permute.xlu0 %673
      %675 = vrot.lane.b32.xlu0 %v469, 111
      %v676 = vpop.permute.xlu0 %675
      %677 = vrot.lane.b32.xlu0 %v472, 111
      %v678 = vpop.permute.xlu0 %677
      %679 = vrot.lane.b32.xlu0 %v475, 111
      %v680 = vpop.permute.xlu0 %679
      %681 = vrot.lane.b32.xlu0 %v478, 111
      %v682 = vpop.permute.xlu0 %681
      %683 = vrot.lane.b32.xlu0 %v470, 111
      %v684 = vpop.permute.xlu0 %683
      %685 = vrot.lane.b32.xlu0 %v473, 111
      %v686 = vpop.permute.xlu0 %685
      %687 = vrot.lane.b32.xlu0 %v476, 111
      %v688 = vpop.permute.xlu0 %687
      %689 = vrot.lane.b32.xlu0 %v479, 111
      %v690 = vpop.permute.xlu0 %689
      %vm691 = vcmp.lt.s32.totalorder %v505, 111
      %v692 = vsel %vm691, %v676, %v684
      %v693 = vsel %vm691, %v678, %v686
      %v694 = vsel %vm691, %v680, %v688
      %v695 = vsel %vm691, %v682, %v690
      %v696 = vsel %vm691, %v668, %v676
      %v697 = vsel %vm691, %v670, %v678
      %v698 = vsel %vm691, %v672, %v680
      %v699 = vsel %vm691, %v674, %v682
      %v700 = vsel %vm691, %v684, %v668
      %v701 = vsel %vm691, %v686, %v670
      %v702 = vsel %vm691, %v688, %v672
      %v703 = vsel %vm691, %v690, %v674
      %704 = vrot.lane.b32.xlu0 %v468, 110
      %v705 = vpop.permute.xlu0 %704
      %706 = vrot.lane.b32.xlu0 %v471, 110
      %v707 = vpop.permute.xlu0 %706
      %708 = vrot.lane.b32.xlu0 %v474, 110
      %v709 = vpop.permute.xlu0 %708
      %710 = vrot.lane.b32.xlu0 %v477, 110
      %v711 = vpop.permute.xlu0 %710
      %712 = vrot.lane.b32.xlu0 %v469, 110
      %v713 = vpop.permute.xlu0 %712
      %714 = vrot.lane.b32.xlu0 %v472, 110
      %v715 = vpop.permute.xlu0 %714
      %716 = vrot.lane.b32.xlu0 %v475, 110
      %v717 = vpop.permute.xlu0 %716
      %718 = vrot.lane.b32.xlu0 %v478, 110
      %v719 = vpop.permute.xlu0 %718
      %720 = vrot.lane.b32.xlu0 %v470, 110
      %v721 = vpop.permute.xlu0 %720
      %722 = vrot.lane.b32.xlu0 %v473, 110
      %v723 = vpop.permute.xlu0 %722
      %724 = vrot.lane.b32.xlu0 %v476, 110
      %v725 = vpop.permute.xlu0 %724
      %726 = vrot.lane.b32.xlu0 %v479, 110
      %v727 = vpop.permute.xlu0 %726
      %vm728 = vcmp.lt.s32.totalorder %v505, 110
      %v729 = vsel %vm728, %v713, %v721
      %v730 = vsel %vm728, %v715, %v723
      %v731 = vsel %vm728, %v717, %v725
      %v732 = vsel %vm728, %v719, %v727
      %v733 = vsel %vm728, %v705, %v713
      %v734 = vsel %vm728, %v707, %v715
      %v735 = vsel %vm728, %v709, %v717
      %v736 = vsel %vm728, %v711, %v719
      %v737 = vsel %vm728, %v721, %v705
      %v738 = vsel %vm728, %v723, %v707
      %v739 = vsel %vm728, %v725, %v709
      %v740 = vsel %vm728, %v727, %v711
      %741 = vrot.lane.b32.xlu0 %v468, 109
      %v742 = vpop.permute.xlu0 %741
      %743 = vrot.lane.b32.xlu0 %v471, 109
      %v744 = vpop.permute.xlu0 %743
      %745 = vrot.lane.b32.xlu0 %v474, 109
      %v746 = vpop.permute.xlu0 %745
      %747 = vrot.lane.b32.xlu0 %v477, 109
      %v748 = vpop.permute.xlu0 %747
      %749 = vrot.lane.b32.xlu0 %v469, 109
      %v750 = vpop.permute.xlu0 %749
      %751 = vrot.lane.b32.xlu0 %v472, 109
      %v752 = vpop.permute.xlu0 %751
      %753 = vrot.lane.b32.xlu0 %v475, 109
      %v754 = vpop.permute.xlu0 %753
      %755 = vrot.lane.b32.xlu0 %v478, 109
      %v756 = vpop.permute.xlu0 %755
      %757 = vrot.lane.b32.xlu0 %v470, 109
      %v758 = vpop.permute.xlu0 %757
      %759 = vrot.lane.b32.xlu0 %v473, 109
      %v760 = vpop.permute.xlu0 %759
      %761 = vrot.lane.b32.xlu0 %v476, 109
      %v762 = vpop.permute.xlu0 %761
      %763 = vrot.lane.b32.xlu0 %v479, 109
      %v764 = vpop.permute.xlu0 %763
      %vm765 = vcmp.lt.s32.totalorder %v505, 109
      %v766 = vsel %vm765, %v750, %v758
      %v767 = vsel %vm765, %v752, %v760
      %v768 = vsel %vm765, %v754, %v762
      %v769 = vsel %vm765, %v756, %v764
      %v770 = vsel %vm765, %v742, %v750
      %v771 = vsel %vm765, %v744, %v752
      %v772 = vsel %vm765, %v746, %v754
      %v773 = vsel %vm765, %v748, %v756
      %v774 = vsel %vm765, %v758, %v742
      %v775 = vsel %vm765, %v760, %v744
      %v776 = vsel %vm765, %v762, %v746
      %v777 = vsel %vm765, %v764, %v748
      %v778 = vld [vmem:[%s1] sm:$0xff]
      %v779 = vld [vmem:[%s1 + $0x8] sm:$0xff]
      %v780 = vld [vmem:[%s1 + $0x10] sm:$0xff]
      %v781 = vld [vmem:[%s1 + $0x18] sm:$0xff]
      %v782 = vld [vmem:[%s1 + $0x20] sm:$0xff]
      %v783 = vld [vmem:[%s1 + $0x28] sm:$0xff]
      %v784 = vld [vmem:[%s1 + $0x30] sm:$0xff]
      %v785 = vld [vmem:[%s1 + $0x38] sm:$0xff]
      %v786 = vld [vmem:[%s1 + $0x40] sm:$0xff]
      %v787 = vld [vmem:[%s1 + $0x48] sm:$0xff]
      %v788 = vld [vmem:[%s1 + $0x50] sm:$0xff]
      %v789 = vld [vmem:[%s1 + $0x58] sm:$0xff]
      %v790 = vld [vmem:[%s2] sm:$0xff]
      %v791 = vld [vmem:[%s2 + $0x8] sm:$0xff]
      %v792 = vld [vmem:[%s2 + $0x10] sm:$0xff]
      %v793 = vld [vmem:[%s2 + $0x18] sm:$0xff]
      %795 = vset.pattern.permute.xlu0 0
      %796 = vperm.xlu0 %795, %v790
      %v797 = vpop.permute.xlu0 %796
      %800 = vset.pattern.permute.xlu0 0
      %801 = vperm.xlu0 %800, %v791
      %v802 = vpop.permute.xlu0 %801
      %805 = vset.pattern.permute.xlu0 0
      %806 = vperm.xlu0 %805, %v792
      %v807 = vpop.permute.xlu0 %806
      %810 = vset.pattern.permute.xlu0 0
      %811 = vperm.xlu0 %810, %v793
      %v812 = vpop.permute.xlu0 %811
      %vm814 = vcmask 261120
      %v816 = vsel %vm814, %v780, 0
      %v819 = vsel %vm814, %v783, 0
      %v822 = vsel %vm814, %v786, 0
      %v825 = vsel %vm814, %v789, 0
      %827 = vmatprep.subr.mxu0 %v625
      %828 = vmatpush1.msra.mxu0 %v629
      %829 = vmatprep.subr.mxu0 %v624
      %830 = vmatpush1.msra.mxu0 %v628
      %831 = vmatprep.subr.mxu0 %v623
      %832 = vmatpush1.msra.mxu0 %v627
      %833 = vmatprep.subr.mxu0 %v622
      %834 = vmatpush1.msra.mxu0 %v626
      %835 = vmatprep.subr.mxu0 %v588
      %836 = vmatpush1.msra.mxu0 %v592
      %837 = vmatprep.subr.mxu0 %v587
      %838 = vmatpush1.msra.mxu0 %v591
      %839 = vmatprep.subr.mxu0 %v586
      %840 = vmatpush1.msra.mxu0 %v590
      %841 = vmatprep.subr.mxu0 %v585
      %842 = vmatpush1.msra.mxu0 %v589
      %843 = vmatprep.subr.mxu0 %v551
      %844 = vmatpush1.msra.mxu0 %v555
      %845 = vmatprep.subr.mxu0 %v550
      %846 = vmatpush1.msra.mxu0 %v554
      %847 = vmatprep.subr.mxu0 %v549
      %848 = vmatpush1.msra.mxu0 %v553
      %849 = vmatprep.subr.mxu0 %v548
      %850 = vmatpush1.msra.mxu0 %v552
      %851 = vmatprep.subr.mxu0 %v514
      %852 = vmatpush1.msra.mxu0 %v518
      %853 = vmatprep.subr.mxu0 %v513
      %854 = vmatpush1.msra.mxu0 %v517
      %855 = vmatprep.subr.mxu0 %v512
      %856 = vmatpush1.msra.mxu0 %v516
      %857 = vmatprep.subr.mxu0 %v511
      %858 = vmatpush1.msra.mxu0 %v515
      %859 = vmatprep.subr.mxu0 %v732
      %860 = vmatpush2.msra.mxu0 %v736
      %861 = vmatprep.subr.mxu0 %v731
      %862 = vmatpush2.msra.mxu0 %v735
      %863 = vmatprep.subr.mxu0 %v730
      %864 = vmatpush2.msra.mxu0 %v734
      %865 = vmatprep.subr.mxu0 %v729
      %866 = vmatpush2.msra.mxu0 %v733
      %867 = vmatprep.subr.mxu0 %v695
      %868 = vmatpush2.msra.mxu0 %v699
      %869 = vmatprep.subr.mxu0 %v694
      %870 = vmatpush2.msra.mxu0 %v698
      %871 = vmatprep.subr.mxu0 %v693
      %872 = vmatpush2.msra.mxu0 %v697
      %873 = vmatprep.subr.mxu0 %v692
      %874 = vmatpush2.msra.mxu0 %v696
      %875 = vmatprep.subr.mxu0 %v658
      %876 = vmatpush2.msra.mxu0 %v662
      %877 = vmatprep.subr.mxu0 %v657
      %878 = vmatpush2.msra.mxu0 %v661
      %879 = vmatprep.subr.mxu0 %v656
      %880 = vmatpush2.msra.mxu0 %v660
      %881 = vmatprep.subr.mxu0 %v655
      %882 = vmatpush2.msra.mxu0 %v659
      %883 = vmatprep.subr.mxu0 %v478
      %884 = vmatpush2.msra.mxu0 %v477
      %885 = vmatprep.subr.mxu0 %v475
      %886 = vmatpush2.msra.mxu0 %v474
      %887 = vmatprep.subr.mxu0 %v472
      %888 = vmatpush2.msra.mxu0 %v471
      %889 = vmatprep.subr.mxu0 %v469
      %890 = vmatpush2.msra.mxu0 %v468
      %891 = vmatprep.mubr.f32.mxu0 %v779
      %892 = vmatmul.mubr.f32.gmra.mxu0 %v778
      %v893 = vpop.f32.mrf.mxu0
      %v894 = vadd.f32 %v797, %v893
      %v895 = vpop.f32.mrf.mxu0
      %v896 = vadd.f32 %v797, %v895
      %897 = vmatprep.mubr.f32.mxu0 %v782
      %898 = vmatmul.mubr.f32.gmra.mxu0 %v781
      %v899 = vpop.f32.mrf.mxu0
      %v900 = vadd.f32 %v802, %v899
      %v901 = vpop.f32.mrf.mxu0
      %v902 = vadd.f32 %v802, %v901
      %903 = vmatprep.mubr.f32.mxu0 %v785
      %904 = vmatmul.mubr.f32.gmra.mxu0 %v784
      %v905 = vpop.f32.mrf.mxu0
      %v906 = vadd.f32 %v807, %v905
      %v907 = vpop.f32.mrf.mxu0
      %v908 = vadd.f32 %v807, %v907
      %909 = vmatprep.mubr.f32.mxu0 %v788
      %910 = vmatmul.mubr.f32.gmra.mxu0 %v787
      %v911 = vpop.f32.mrf.mxu0
      %v912 = vadd.f32 %v812, %v911
      %v913 = vpop.f32.mrf.mxu0
      %v914 = vadd.f32 %v812, %v913
      %915 = vdwg.mxu0
      %916 = vmatprep.subr.mxu0 0.0
      %917 = vmatpush1.msra.mxu0 0.0
      %918 = vmatprep.subr.mxu0 0.0
      %919 = vmatpush1.msra.mxu0 0.0
      %920 = vmatprep.subr.mxu0 0.0
      %921 = vmatpush1.msra.mxu0 0.0
      %922 = vmatprep.subr.mxu0 0.0
      %923 = vmatpush1.msra.mxu0 0.0
      %924 = vmatprep.subr.mxu0 0.0
      %925 = vmatpush1.msra.mxu0 0.0
      %926 = vmatprep.subr.mxu0 0.0
      %927 = vmatpush1.msra.mxu0 0.0
      %928 = vmatprep.subr.mxu0 0.0
      %929 = vmatpush1.msra.mxu0 0.0
      %930 = vmatprep.subr.mxu0 0.0
      %931 = vmatpush1.msra.mxu0 0.0
      %932 = vmatprep.subr.mxu0 0.0
      %933 = vmatpush1.msra.mxu0 0.0
      %934 = vmatprep.subr.mxu0 0.0
      %935 = vmatpush1.msra.mxu0 0.0
      %936 = vmatprep.subr.mxu0 0.0
      %937 = vmatpush1.msra.mxu0 0.0
      %938 = vmatprep.subr.mxu0 0.0
      %939 = vmatpush1.msra.mxu0 0.0
      %940 = vmatprep.subr.mxu0 %v769
      %941 = vmatpush1.msra.mxu0 %v773
      %942 = vmatprep.subr.mxu0 %v768
      %943 = vmatpush1.msra.mxu0 %v772
      %944 = vmatprep.subr.mxu0 %v767
      %945 = vmatpush1.msra.mxu0 %v771
      %946 = vmatprep.subr.mxu0 %v766
      %947 = vmatpush1.msra.mxu0 %v770
      %948 = vmatprep.subr.mxu0 0.0
      %949 = vmatpush2.msra.mxu0 0.0
      %950 = vmatprep.subr.mxu0 0.0
      %951 = vmatpush2.msra.mxu0 0.0
      %952 = vmatprep.subr.mxu0 0.0
      %953 = vmatpush2.msra.mxu0 0.0
      %954 = vmatprep.subr.mxu0 0.0
      %955 = vmatpush2.msra.mxu0 0.0
      %956 = vmatprep.subr.mxu0 0.0
      %957 = vmatpush2.msra.mxu0 0.0
      %958 = vmatprep.subr.mxu0 0.0
      %959 = vmatpush2.msra.mxu0 0.0
      %960 = vmatprep.subr.mxu0 0.0
      %961 = vmatpush2.msra.mxu0 0.0
      %962 = vmatprep.subr.mxu0 0.0
      %963 = vmatpush2.msra.mxu0 0.0
      %964 = vmatprep.subr.mxu0 0.0
      %965 = vmatpush2.msra.mxu0 0.0
      %966 = vmatprep.subr.mxu0 0.0
      %967 = vmatpush2.msra.mxu0 0.0
      %968 = vmatprep.subr.mxu0 0.0
      %969 = vmatpush2.msra.mxu0 0.0
      %970 = vmatprep.subr.mxu0 0.0
      %971 = vmatpush2.msra.mxu0 0.0
      %972 = vmatprep.subr.mxu0 0.0
      %973 = vmatpush2.msra.mxu0 0.0
      %974 = vmatprep.subr.mxu0 0.0
      %975 = vmatpush2.msra.mxu0 0.0
      %976 = vmatprep.subr.mxu0 0.0
      %977 = vmatpush2.msra.mxu0 0.0
      %978 = vmatprep.subr.mxu0 0.0
      %979 = vmatpush2.msra.mxu0 0.0
      %980 = vmatprep.mubr.f32.mxu0 0.0
      %981 = vmatmul.mubr.f32.gmra.mxu0 %v816
      %v982 = vpop.f32.mrf.mxu0
      %v983 = vadd.f32 %v894, %v982
      %v984 = vpop.f32.mrf.mxu0
      %v985 = vadd.f32 %v896, %v984
      %986 = vmatprep.mubr.f32.mxu0 0.0
      %987 = vmatmul.mubr.f32.gmra.mxu0 %v819
      %v988 = vpop.f32.mrf.mxu0
      %v989 = vadd.f32 %v900, %v988
      %v990 = vpop.f32.mrf.mxu0
      %v991 = vadd.f32 %v902, %v990
      %992 = vmatprep.mubr.f32.mxu0 0.0
      %993 = vmatmul.mubr.f32.gmra.mxu0 %v822
      %v994 = vpop.f32.mrf.mxu0
      %v995 = vadd.f32 %v906, %v994
      %v996 = vpop.f32.mrf.mxu0
      %v997 = vadd.f32 %v908, %v996
      %998 = vmatprep.mubr.f32.mxu0 0.0
      %999 = vmatmul.mubr.f32.gmra.mxu0 %v825
      %v1000 = vpop.f32.mrf.mxu0
      %v1001 = vadd.f32 %v912, %v1000
      %v1002 = vpop.f32.mrf.mxu0
      %v1003 = vadd.f32 %v914, %v1002
      %1004 = vdwg.mxu0
      %1005 = vmatprep.subr.mxu0 0.0
      %1006 = vmatpush1.msra.mxu0 %v621
      %1007 = vmatprep.subr.mxu0 0.0
      %1008 = vmatpush1.msra.mxu0 %v620
      %1009 = vmatprep.subr.mxu0 0.0
      %1010 = vmatpush1.msra.mxu0 %v619
      %1011 = vmatprep.subr.mxu0 0.0
      %1012 = vmatpush1.msra.mxu0 %v618
      %1013 = vmatprep.subr.mxu0 0.0
      %1014 = vmatpush1.msra.mxu0 %v584
      %1015 = vmatprep.subr.mxu0 0.0
      %1016 = vmatpush1.msra.mxu0 %v583
      %1017 = vmatprep.subr.mxu0 0.0
      %1018 = vmatpush1.msra.mxu0 %v582
      %1019 = vmatprep.subr.mxu0 0.0
      %1020 = vmatpush1.msra.mxu0 %v581
      %1021 = vmatprep.subr.mxu0 0.0
      %1022 = vmatpush1.msra.mxu0 %v547
      %1023 = vmatprep.subr.mxu0 0.0
      %1024 = vmatpush1.msra.mxu0 %v546
      %1025 = vmatprep.subr.mxu0 0.0
      %1026 = vmatpush1.msra.mxu0 %v545
      %1027 = vmatprep.subr.mxu0 0.0
      %1028 = vmatpush1.msra.mxu0 %v544
      %1029 = vmatprep.subr.mxu0 0.0
      %1030 = vmatpush1.msra.mxu0 %v510
      %1031 = vmatprep.subr.mxu0 0.0
      %1032 = vmatpush1.msra.mxu0 %v509
      %1033 = vmatprep.subr.mxu0 0.0
      %1034 = vmatpush1.msra.mxu0 %v508
      %1035 = vmatprep.subr.mxu0 0.0
      %1036 = vmatpush1.msra.mxu0 %v507
      %1037 = vmatprep.subr.mxu0 0.0
      %1038 = vmatpush2.msra.mxu0 %v740
      %1039 = vmatprep.subr.mxu0 0.0
      %1040 = vmatpush2.msra.mxu0 %v739
      %1041 = vmatprep.subr.mxu0 0.0
      %1042 = vmatpush2.msra.mxu0 %v738
      %1043 = vmatprep.subr.mxu0 0.0
      %1044 = vmatpush2.msra.mxu0 %v737
      %1045 = vmatprep.subr.mxu0 0.0
      %1046 = vmatpush2.msra.mxu0 %v703
      %1047 = vmatprep.subr.mxu0 0.0
      %1048 = vmatpush2.msra.mxu0 %v702
      %1049 = vmatprep.subr.mxu0 0.0
      %1050 = vmatpush2.msra.mxu0 %v701
      %1051 = vmatprep.subr.mxu0 0.0
      %1052 = vmatpush2.msra.mxu0 %v700
      %1053 = vmatprep.subr.mxu0 0.0
      %1054 = vmatpush2.msra.mxu0 %v666
      %1055 = vmatprep.subr.mxu0 0.0
      %1056 = vmatpush2.msra.mxu0 %v665
      %1057 = vmatprep.subr.mxu0 0.0
      %1058 = vmatpush2.msra.mxu0 %v664
      %1059 = vmatprep.subr.mxu0 0.0
      %1060 = vmatpush2.msra.mxu0 %v663
      %1061 = vmatprep.subr.mxu0 0.0
      %1062 = vmatpush2.msra.mxu0 %v479
      %1063 = vmatprep.subr.mxu0 0.0
      %1064 = vmatpush2.msra.mxu0 %v476
      %1065 = vmatprep.subr.mxu0 0.0
      %1066 = vmatpush2.msra.mxu0 %v473
      %1067 = vmatprep.subr.mxu0 0.0
      %1068 = vmatpush2.msra.mxu0 %v470
      %1069 = vmatprep.mubr.f32.mxu0 %v779
      %1070 = vmatmul.mubr.f32.gmra.mxu0 %v778
      %v1071 = vpop.f32.mrf.mxu0
      %v1072 = vadd.f32 %v797, %v1071
      %v1073 = vpop.f32.mrf.mxu0
      %1074 = vmatprep.mubr.f32.mxu0 %v782
      %1075 = vmatmul.mubr.f32.gmra.mxu0 %v781
      %v1076 = vpop.f32.mrf.mxu0
      %v1077 = vadd.f32 %v802, %v1076
      %v1078 = vpop.f32.mrf.mxu0
      %1079 = vmatprep.mubr.f32.mxu0 %v785
      %1080 = vmatmul.mubr.f32.gmra.mxu0 %v784
      %v1081 = vpop.f32.mrf.mxu0
      %v1082 = vadd.f32 %v807, %v1081
      %v1083 = vpop.f32.mrf.mxu0
      %1084 = vmatprep.mubr.f32.mxu0 %v788
      %1085 = vmatmul.mubr.f32.gmra.mxu0 %v787
      %v1086 = vpop.f32.mrf.mxu0
      %v1087 = vadd.f32 %v812, %v1086
      %v1088 = vpop.f32.mrf.mxu0
      %1089 = vdwg.mxu0
      %1090 = vmatprep.subr.mxu0 0.0
      %1091 = vmatpush1.msra.mxu0 0.0
      %1092 = vmatprep.subr.mxu0 0.0
      %1093 = vmatpush1.msra.mxu0 0.0
      %1094 = vmatprep.subr.mxu0 0.0
      %1095 = vmatpush1.msra.mxu0 0.0
      %1096 = vmatprep.subr.mxu0 0.0
      %1097 = vmatpush1.msra.mxu0 0.0
      %1098 = vmatprep.subr.mxu0 0.0
      %1099 = vmatpush1.msra.mxu0 0.0
      %1100 = vmatprep.subr.mxu0 0.0
      %1101 = vmatpush1.msra.mxu0 0.0
      %1102 = vmatprep.subr.mxu0 0.0
      %1103 = vmatpush1.msra.mxu0 0.0
      %1104 = vmatprep.subr.mxu0 0.0
      %1105 = vmatpush1.msra.mxu0 0.0
      %1106 = vmatprep.subr.mxu0 0.0
      %1107 = vmatpush1.msra.mxu0 0.0
      %1108 = vmatprep.subr.mxu0 0.0
      %1109 = vmatpush1.msra.mxu0 0.0
      %1110 = vmatprep.subr.mxu0 0.0
      %1111 = vmatpush1.msra.mxu0 0.0
      %1112 = vmatprep.subr.mxu0 0.0
      %1113 = vmatpush1.msra.mxu0 0.0
      %1114 = vmatprep.subr.mxu0 0.0
      %1115 = vmatpush1.msra.mxu0 %v777
      %1116 = vmatprep.subr.mxu0 0.0
      %1117 = vmatpush1.msra.mxu0 %v776
      %1118 = vmatprep.subr.mxu0 0.0
      %1119 = vmatpush1.msra.mxu0 %v775
      %1120 = vmatprep.subr.mxu0 0.0
      %1121 = vmatpush1.msra.mxu0 %v774
      %1122 = vmatprep.subr.mxu0 0.0
      %1123 = vmatpush2.msra.mxu0 0.0
      %1124 = vmatprep.subr.mxu0 0.0
      %1125 = vmatpush2.msra.mxu0 0.0
      %1126 = vmatprep.subr.mxu0 0.0
      %1127 = vmatpush2.msra.mxu0 0.0
      %1128 = vmatprep.subr.mxu0 0.0
      %1129 = vmatpush2.msra.mxu0 0.0
      %1130 = vmatprep.subr.mxu0 0.0
      %1131 = vmatpush2.msra.mxu0 0.0
      %1132 = vmatprep.subr.mxu0 0.0
      %1133 = vmatpush2.msra.mxu0 0.0
      %1134 = vmatprep.subr.mxu0 0.0
      %1135 = vmatpush2.msra.mxu0 0.0
      %1136 = vmatprep.subr.mxu0 0.0
      %1137 = vmatpush2.msra.mxu0 0.0
      %1138 = vmatprep.subr.mxu0 0.0
      %1139 = vmatpush2.msra.mxu0 0.0
      %1140 = vmatprep.subr.mxu0 0.0
      %1141 = vmatpush2.msra.mxu0 0.0
      %1142 = vmatprep.subr.mxu0 0.0
      %1143 = vmatpush2.msra.mxu0 0.0
      %1144 = vmatprep.subr.mxu0 0.0
      %1145 = vmatpush2.msra.mxu0 0.0
      %1146 = vmatprep.subr.mxu0 0.0
      %1147 = vmatpush2.msra.mxu0 0.0
      %1148 = vmatprep.subr.mxu0 0.0
      %1149 = vmatpush2.msra.mxu0 0.0
      %1150 = vmatprep.subr.mxu0 0.0
      %1151 = vmatpush2.msra.mxu0 0.0
      %1152 = vmatprep.subr.mxu0 0.0
      %1153 = vmatpush2.msra.mxu0 0.0
      %1154 = vmatprep.mubr.f32.mxu0 0.0
      %1155 = vmatmul.mubr.f32.gmra.mxu0 %v816
      %v1156 = vpop.f32.mrf.mxu0
      %v1157 = vadd.f32 %v1072, %v1156
      %v1158 = vpop.f32.mrf.mxu0
      %1159 = vmatprep.mubr.f32.mxu0 0.0
      %1160 = vmatmul.mubr.f32.gmra.mxu0 %v819
      %v1161 = vpop.f32.mrf.mxu0
      %v1162 = vadd.f32 %v1077, %v1161
      %v1163 = vpop.f32.mrf.mxu0
      %1164 = vmatprep.mubr.f32.mxu0 0.0
      %1165 = vmatmul.mubr.f32.gmra.mxu0 %v822
      %v1166 = vpop.f32.mrf.mxu0
      %v1167 = vadd.f32 %v1082, %v1166
      %v1168 = vpop.f32.mrf.mxu0
      %1169 = vmatprep.mubr.f32.mxu0 0.0
      %1170 = vmatmul.mubr.f32.gmra.mxu0 %v825
      %v1171 = vpop.f32.mrf.mxu0
      %v1172 = vadd.f32 %v1087, %v1171
      %v1173 = vpop.f32.mrf.mxu0
      %1174 = vdwg.mxu0
      %1175 = vst [vmem:[%s320] sm:$0xff] %v983
      %1176 = vst [vmem:[%s320 + $0x8] sm:$0xff] %v985
      %1177 = vst [vmem:[%s320 + $0x10] sm:$0xff] %v1157
      %1178 = vst [vmem:[%s320 + $0x18] sm:$0xff] %v989
      %1179 = vst [vmem:[%s320 + $0x20] sm:$0xff] %v991
      %1180 = vst [vmem:[%s320 + $0x28] sm:$0xff] %v1162
      %1181 = vst [vmem:[%s320 + $0x30] sm:$0xff] %v995
      %1182 = vst [vmem:[%s320 + $0x38] sm:$0xff] %v997
      %1183 = vst [vmem:[%s320 + $0x40] sm:$0xff] %v1167
      %1184 = vst [vmem:[%s320 + $0x48] sm:$0xff] %v1001
      %1185 = vst [vmem:[%s320 + $0x50] sm:$0xff] %v1003
      %1186 = vst [vmem:[%s320 + $0x58] sm:$0xff] %v1172
      %v1187 = vld [vmem:[%s5] sm:$0x7]
      %v1189 = vlaneseq
      %v1190 = vshrl.u32 %v1189, 7
      %v1191 = vsub.s32 0, %v1190
      %v1192 = vrot.slane %v1187, %v1191
      %v1193 = vlaneseq
      %v1194 = vshrl.u32 %v1193, 7
      %v1195 = vsub.s32 1, %v1194
      %v1196 = vrot.slane %v1187, %v1195
      %v1197 = vlaneseq
      %v1198 = vshrl.u32 %v1197, 7
      %v1199 = vsub.s32 2, %v1198
      %v1200 = vrot.slane %v1187, %v1199
      %v1204 = vmul.f32 %v983, %v1192
      %v1205 = vmul.f32 %v985, %v1196
      %v1206 = vmul.f32 %v1157, %v1200
      %v1207 = vmul.f32 %v989, %v1192
      %v1208 = vmul.f32 %v991, %v1196
      %v1209 = vmul.f32 %v1162, %v1200
      %v1210 = vmul.f32 %v995, %v1192
      %v1211 = vmul.f32 %v997, %v1196
      %v1212 = vmul.f32 %v1167, %v1200
      %v1213 = vmul.f32 %v1001, %v1192
      %v1214 = vmul.f32 %v1003, %v1196
      %v1215 = vmul.f32 %v1172, %v1200
      %v1216 = vadd.f32 %v1204, %v1205
      %v1217 = vadd.f32 %v1216, %v1206
      %1218 = vadd.xlane.f32.xlu0 %v1217
      %v1219 = vpop.xlane.xlu0 %1218
      %v1220 = vadd.f32 %v1207, %v1208
      %v1221 = vadd.f32 %v1220, %v1209
      %1222 = vadd.xlane.f32.xlu0 %v1221
      %v1223 = vpop.xlane.xlu0 %1222
      %v1224 = vadd.f32 %v1210, %v1211
      %v1225 = vadd.f32 %v1224, %v1212
      %1226 = vadd.xlane.f32.xlu0 %v1225
      %v1227 = vpop.xlane.xlu0 %1226
      %v1228 = vadd.f32 %v1213, %v1214
      %v1229 = vadd.f32 %v1228, %v1215
      %1230 = vadd.xlane.f32.xlu0 %v1229
      %v1231 = vpop.xlane.xlu0 %1230
      %vm1232 = vcmask 7168
      %1233 = vst.msk [vmem:[%s325] sm:$0xff] %vm1232, %v1219
      %1234 = vst.msk [vmem:[%s325 + $0x8] sm:$0xff] %vm1232, %v1223
      %1235 = vst.msk [vmem:[%s325 + $0x10] sm:$0xff] %vm1232, %v1227
      %1236 = vst.msk [vmem:[%s325 + $0x18] sm:$0xff] %vm1232, %v1231
      %v1237 = vmul.f32 %v1204, %v1204
      %v1238 = vmul.f32 %v1205, %v1205
      %v1239 = vmul.f32 %v1206, %v1206
      %v1240 = vmul.f32 %v1207, %v1207
      %v1241 = vmul.f32 %v1208, %v1208
      %v1242 = vmul.f32 %v1209, %v1209
      %v1243 = vmul.f32 %v1210, %v1210
      %v1244 = vmul.f32 %v1211, %v1211
      %v1245 = vmul.f32 %v1212, %v1212
      %v1246 = vmul.f32 %v1213, %v1213
      %v1247 = vmul.f32 %v1214, %v1214
      %v1248 = vmul.f32 %v1215, %v1215
      %v1249 = vadd.f32 %v1237, %v1238
      %v1250 = vadd.f32 %v1249, %v1239
      %1251 = vadd.xlane.f32.xlu0 %v1250
      %v1252 = vpop.xlane.xlu0 %1251
      %v1253 = vadd.f32 %v1240, %v1241
      %v1254 = vadd.f32 %v1253, %v1242
      %1255 = vadd.xlane.f32.xlu0 %v1254
      %v1256 = vpop.xlane.xlu0 %1255
      %v1257 = vadd.f32 %v1243, %v1244
      %v1258 = vadd.f32 %v1257, %v1245
      %1259 = vadd.xlane.f32.xlu0 %v1258
      %v1260 = vpop.xlane.xlu0 %1259
      %v1261 = vadd.f32 %v1246, %v1247
      %v1262 = vadd.f32 %v1261, %v1248
      %1263 = vadd.xlane.f32.xlu0 %v1262
      %v1264 = vpop.xlane.xlu0 %1263
      %1265 = vst.msk [vmem:[%s330] sm:$0xff] %vm1232, %v1252
      %1266 = vst.msk [vmem:[%s330 + $0x8] sm:$0xff] %vm1232, %v1256
      %1267 = vst.msk [vmem:[%s330 + $0x10] sm:$0xff] %vm1232, %v1260
      %1268 = vst.msk [vmem:[%s330 + $0x18] sm:$0xff] %vm1232, %v1264
      %p1269 = scmp.lt.s32.totalorder %s20, 1
      %s1270 = scalar_select %p1269, %s20, 1
      %s1271 = smul.addr %s1270, 12
      %s1272 = smul.addr %s1271, 8
      %s1273 = scalar_lea.vmem %s6, %s1272
      %p1274 = scmp.lt.s32.totalorder %s20, 1
      %s1275 = scalar_select %p1274, %s20, 1
      %s1276 = smul.addr %s1275, 4
      %s1277 = smul.addr %s1276, 8
      %s1278 = scalar_lea.vmem %s7, %s1277
      %p1279 = scmp.lt.s32.totalorder %s20, 1
      %s1280 = scalar_select %p1279, %s20, 1
      %s1281 = smul.addr %s1280, 4
      %s1282 = smul.addr %s1281, 8
      %s1283 = scalar_lea.vmem %s8, %s1282
      // Predicated region
      $region45: #{double_conv.3} parent=43 // pred_check
        %p1284 = pneg %p169
      $region46: #{double_conv.3} parent=43 // pred_check_branch
        %1286 = sbr.rel (%p1284) target = $region48
      $region47: #{double_conv.3} parent=43 // pred_region
        _
      $region48: #{double_conv.3} parent=43 // pred_fallthru
        _
      // Predicated region
      $region49: #{double_conv.3} parent=43 // pred_check
        %p1287 = pneg %p195
      $region50: #{double_conv.3} parent=43 // pred_check_branch
        %1289 = sbr.rel (%p1287) target = $region52
      $region51: #{double_conv.3} parent=43 // pred_region
        _
      $region52: #{double_conv.3} parent=43 // pred_fallthru
        _
      // Predicated region
      $region53: #{double_conv.3} parent=43 // pred_check
        %p1290 = pneg %p221
      $region54: #{double_conv.3} parent=43 // pred_check_branch
        %1292 = sbr.rel (%p1290) target = $region56
      $region55: #{double_conv.3} parent=43 // pred_region
        _
      $region56: #{double_conv.3} parent=43 // pred_fallthru
        _
    $region44: #{double_conv.3} parent=5 // pred_fallthru
      _
    %p1293 = scmp.le.s32.totalorder 2, %s15
    // Predicated region
    $region57: #{double_conv.3} parent=5 // pred_check
      %p1294 = pneg %p1293
    $region58: #{double_conv.3} parent=5 // pred_check_branch
      %1296 = sbr.rel (%p1294) target = $region60
    $region59: #{double_conv.3} parent=5 // pred_region
      %s1297 = ssub.s32 %s15, 2
      // Predicated region
      $region61: #{double_conv.3} parent=59 // pred_check
        %p1298 = pneg %p175
      $region62: #{double_conv.3} parent=59 // pred_check_branch
        %1300 = sbr.rel (%p1298) target = $region64
      $region63: #{double_conv.3} parent=59 // pred_region
        %p1301 = scmp.lt.s32.totalorder %s21, 1
        %s1302 = scalar_select %p1301, %s21, 1
        %s1303 = smul.addr %s1302, 12
        %s1304 = smul.addr %s1303, 8
        %s1305 = scalar_lea.vmem %s6, %s1304
      $region64: #{double_conv.3} parent=59 // pred_fallthru
        _
      // Predicated region
      $region65: #{double_conv.3} parent=59 // pred_check
        %p1306 = pneg %p201
      $region66: #{double_conv.3} parent=59 // pred_check_branch
        %1308 = sbr.rel (%p1306) target = $region68
      $region67: #{double_conv.3} parent=59 // pred_region
        %p1309 = scmp.lt.s32.totalorder %s21, 1
        %s1310 = scalar_select %p1309, %s21, 1
        %s1311 = smul.addr %s1310, 4
        %s1312 = smul.addr %s1311, 8
        %s1313 = scalar_lea.vmem %s7, %s1312
      $region68: #{double_conv.3} parent=59 // pred_fallthru
        _
      // Predicated region
      $region69: #{double_conv.3} parent=59 // pred_check
        %p1314 = pneg %p227
      $region70: #{double_conv.3} parent=59 // pred_check_branch
        %1316 = sbr.rel (%p1314) target = $region72
      $region71: #{double_conv.3} parent=59 // pred_region
        %p1317 = scmp.lt.s32.totalorder %s21, 1
        %s1318 = scalar_select %p1317, %s21, 1
        %s1319 = smul.addr %s1318, 4
        %s1320 = smul.addr %s1319, 8
        %s1321 = scalar_lea.vmem %s8, %s1320
      $region72: #{double_conv.3} parent=59 // pred_fallthru
        _
    $region60: #{double_conv.3} parent=5 // pred_fallthru
      _
  $region6: #{double_conv.3} parent=0 // loop_footer
    %s19 = sadd.s32 1, %s15
  $region7: #{double_conv.3} parent=0 // loop_footer_branch
    %14 = sbr.rel target = $region3
  $region8: #{double_conv.3} parent=0 // loop_exit
    _

</llo_original>
